<compile_context>
chip_gen: v7x
topology: tpu7x:2x2x1
jax: 0.10.0
libtpu: 0.0.40
codegen_flags: <defaults>
</compile_context>

<pallas_src>
import jax
import jax.numpy as jnp
from jax.experimental import pallas as pl
from jax.experimental.pallas import tpu as pltpu


def ffn_kernel(x_ref, w1_ref, b1_ref, w2_ref, b2_ref, o_ref):
    # x_ref:  (tm, D)  tile of flattened input rows (streamed, double-buffered)
    # w1_ref: (D, H)   first linear weight (in, out)   -- resident
    # b1_ref: (1, H)   first bias
    # w2_ref: (H, D)   second linear weight (in, out)  -- resident
    # b2_ref: (1, D)   second bias
    # o_ref:  (tm, D)  output tile
    x = x_ref[...]

    # Linear 1 (MXU) with f32 accumulation + bias.
    h = jnp.dot(x, w1_ref[...], preferred_element_type=jnp.float32) + b1_ref[...]

    # Swish in f32: h * sigmoid(h)  (EUP handles the exp; VPU does the mul).
    h = h * jax.nn.sigmoid(h)

    # Linear 2 (MXU) + bias.  Cast back to the input dtype before the second
    # dot (bf16 fast path when the caller uses bf16; no-op for f32).
    y = jnp.dot(h.astype(x.dtype), w2_ref[...],
                preferred_element_type=jnp.float32) + b2_ref[...]

    o_ref[...] = y.astype(o_ref.dtype)


def _round_up(x, m):
    return ((x + m - 1) // m) * m


def _build_and_call(x2d, w1, b1_2d, w2, b2_2d, *, tm, vmem_limit, weight_mode):
    M_pad, D = x2d.shape
    H = w1.shape[1]

    def const_spec(shape):
        if weight_mode is None:
            return pl.BlockSpec(shape, lambda i: (0, 0))
        return pl.BlockSpec(shape, lambda i: (0, 0), pipeline_mode=weight_mode)

    return pl.pallas_call(
        ffn_kernel,
        out_shape=jax.ShapeDtypeStruct((M_pad, D), x2d.dtype),
        grid_spec=pltpu.PrefetchScalarGridSpec(
            num_scalar_prefetch=0,
            grid=(M_pad // tm,),
            in_specs=[
                pl.BlockSpec((tm, D), lambda i: (i, 0)),   # x rows (streamed)
                const_spec((D, H)),                        # W1 (resident)
                const_spec((1, H)),                        # b1
                const_spec((H, D)),                        # W2 (resident)
                const_spec((1, D)),                        # b2
            ],
            out_specs=pl.BlockSpec((tm, D), lambda i: (i, 0)),
        ),
        compiler_params=pltpu.CompilerParams(
            dimension_semantics=("parallel",),
            vmem_limit_bytes=vmem_limit,
        ),
    )(x2d, w1, b1_2d, w2, b2_2d)


def feed_forward_module(x, w1, b1, w2, b2, *, tm=256):
    """x: (batch, time, dim) -> (batch, time, dim). Inference-mode FFN."""
    B, T, D = x.shape
    H = w1.shape[1]
    M = B * T

    # Effective row tile: MXU-friendly (multiple of 8 sublanes), but never
    # larger than the 8-aligned row count (tiny inputs don't pay for huge
    # padding) and clamped so the f32 (tm, H) intermediate stays ~<= 8 MiB.
    tm_eff = min(tm, _round_up(M, 8))
    tm_eff = max(8, min(tm_eff, _round_up(max(8, (8 << 20) // (4 * H)), 8)))
    tm_eff = _round_up(tm_eff, 8)
    M_pad = _round_up(M, tm_eff)

    x2d = x.reshape(M, D)
    if M_pad != M:
        x2d = jnp.pad(x2d, ((0, M_pad - M), (0, 0)))

    b1_2d = b1.reshape(1, H)
    b2_2d = b2.reshape(1, D)

    # Explicit VMEM budget: single-buffered resident weights/biases,
    # double-buffered streamed x/out tiles, f32 intermediates, plus headroom.
    itemsize = jnp.dtype(x.dtype).itemsize
    vmem_bytes = (
        (D * H + H * D + H + D) * itemsize          # resident weights + biases
        + 2 * 2 * tm_eff * D * itemsize             # double-buffered x / out tiles
        + 2 * tm_eff * max(H, D) * 4                # f32 intermediates in-kernel
    )
    # Floor 32 MiB, cap 64 MiB (physical VMEM per core on v7x).
    vmem_limit = min(max(2 * int(vmem_bytes) + (8 << 20), 32 << 20), 64 << 20)

    try:
        # Constant index_map -> weights never re-fetched; single-buffer them.
        out2d = _build_and_call(x2d, w1, b1_2d, w2, b2_2d,
                                tm=tm_eff, vmem_limit=vmem_limit,
                                weight_mode=pl.Buffered(1))
        out2d = jax.block_until_ready(out2d)
    except Exception:
        # Fallback for runtimes without pipeline_mode support on BlockSpec.
        out2d = _build_and_call(x2d, w1, b1_2d, w2, b2_2d,
                                tm=tm_eff, vmem_limit=vmem_limit,
                                weight_mode=None)

    if M_pad != M:
        out2d = out2d[:M]
    return out2d.reshape(B, T, D)


def init_params(key, encoder_dim, expansion_factor, dtype=jnp.float32):
    """Deterministic init matching nn.Linear shapes (stored transposed: (in, out))."""
    hidden = encoder_dim * expansion_factor
    k1, k2, k3, k4 = jax.random.split(key, 4)
    # PyTorch Linear default: U(-1/sqrt(fan_in), 1/sqrt(fan_in))
    lim1 = 1.0 / (encoder_dim ** 0.5)
    lim2 = 1.0 / (hidden ** 0.5)
    w1 = jax.random.uniform(k1, (encoder_dim, hidden), dtype, -lim1, lim1)
    b1 = jax.random.uniform(k2, (hidden,), dtype, -lim1, lim1)
    w2 = jax.random.uniform(k3, (hidden, encoder_dim), dtype, -lim2, lim2)
    b2 = jax.random.uniform(k4, (encoder_dim,), dtype, -lim2, lim2)
    return w1, b1, w2, b2


if __name__ == "__main__":
    # Small shapes consistent with (batch, time, dim) inputs.
    # encoder_dim is a multiple of 128 (lane-dense stores); time chosen so the
    # row count exercises the padding/tail path (2*10 = 20 rows -> padded to 24).
    batch, time, encoder_dim, expansion_factor = 2, 10, 128, 4

    key = jax.random.PRNGKey(0)
    kx, kp = jax.random.split(key)
    x = jax.random.normal(kx, (batch, time, encoder_dim), dtype=jnp.float32)
    w1, b1, w2, b2 = init_params(kp, encoder_dim, expansion_factor)

    out = feed_forward_module(x, w1, b1, w2, b2)
    out = jax.block_until_ready(out)

    # Pure-JAX reference check (same math: linear -> swish -> linear).
    h_ref = x @ w1 + b1
    h_ref = h_ref * jax.nn.sigmoid(h_ref)
    ref = h_ref @ w2 + b2
    assert out.shape == (batch, time, encoder_dim)
    assert jnp.allclose(out, ref, atol=1e-4, rtol=1e-4)

    print("KERNEL_OK")
</pallas_src>

<mosaic_0001>
module attributes {stable_mosaic.version = 11 : i64} {
  func.func @ffn_kernel(%arg0: i32, %arg1: memref<24x128xf32, #tpu.memory_space<vmem>>, %arg2: memref<128x512xf32, #tpu.memory_space<vmem>>, %arg3: memref<1x512xf32, #tpu.memory_space<vmem>>, %arg4: memref<512x128xf32, #tpu.memory_space<vmem>>, %arg5: memref<1x128xf32, #tpu.memory_space<vmem>>, %arg6: memref<24x128xf32, #tpu.memory_space<vmem>>) attributes {dimension_semantics = [#tpu.dimension_semantics<parallel>], iteration_bounds = array<i64: 1>, scalar_prefetch = 0 : i64, scratch_operands = 0 : i64, tpu.core_type = #tpu.core_type<tc>, window_params = [{transform_indices = @transform_0, window_bounds = array<i64: 24, 128>}, {pipeline_mode = #tpu.pipeline_mode<synchronous>, transform_indices = @transform_1, window_bounds = array<i64: 128, 512>}, {pipeline_mode = #tpu.pipeline_mode<synchronous>, transform_indices = @transform_2, window_bounds = array<i64: 1, 512>}, {pipeline_mode = #tpu.pipeline_mode<synchronous>, transform_indices = @transform_3, window_bounds = array<i64: 512, 128>}, {pipeline_mode = #tpu.pipeline_mode<synchronous>, transform_indices = @transform_4, window_bounds = array<i64: 1, 128>}, {transform_indices = @transform_5, window_bounds = array<i64: 24, 128>}]} {
    %c0 = arith.constant 0 : index
    %c0_0 = arith.constant 0 : index
    %0 = vector.load %arg1[%c0, %c0_0] : memref<24x128xf32, #tpu.memory_space<vmem>>, vector<24x128xf32>
    %c0_1 = arith.constant 0 : index
    %c0_2 = arith.constant 0 : index
    %1 = vector.load %arg2[%c0_1, %c0_2] : memref<128x512xf32, #tpu.memory_space<vmem>>, vector<128x512xf32>
    %cst = arith.constant dense<0.000000e+00> : vector<24x512xf32>
    %2 = tpu.matmul %0, %1, %cst {dimension_numbers = #tpu.dot_dimension_numbers<[1], [0], [0], [1], [0, 0, 1, 1], [], []>} : vector<24x128xf32>, vector<128x512xf32>, vector<24x512xf32> -> vector<24x512xf32>
    %c0_3 = arith.constant 0 : index
    %c0_4 = arith.constant 0 : index
    %3 = vector.load %arg3[%c0_3, %c0_4] : memref<1x512xf32, #tpu.memory_space<vmem>>, vector<1x512xf32>
    %4 = vector.broadcast %3 : vector<1x512xf32> to vector<24x512xf32>
    %5 = arith.addf %2, %4 : vector<24x512xf32>
    %6 = arith.negf %5 : vector<24x512xf32>
    %7 = math.exp %6 : vector<24x512xf32>
    %cst_5 = arith.constant 1.000000e+00 : f32
    %8 = vector.broadcast %cst_5 : f32 to vector<24x512xf32>
    %9 = arith.addf %8, %7 : vector<24x512xf32>
    %10 = arith.divf %8, %9 : vector<24x512xf32>
    %11 = arith.mulf %5, %10 : vector<24x512xf32>
    %c0_6 = arith.constant 0 : index
    %c0_7 = arith.constant 0 : index
    %12 = vector.load %arg4[%c0_6, %c0_7] : memref<512x128xf32, #tpu.memory_space<vmem>>, vector<512x128xf32>
    %cst_8 = arith.constant dense<0.000000e+00> : vector<24x128xf32>
    %13 = tpu.matmul %11, %12, %cst_8 {dimension_numbers = #tpu.dot_dimension_numbers<[1], [0], [0], [1], [0, 0, 1, 1], [], []>} : vector<24x512xf32>, vector<512x128xf32>, vector<24x128xf32> -> vector<24x128xf32>
    %c0_9 = arith.constant 0 : index
    %c0_10 = arith.constant 0 : index
    %14 = vector.load %arg5[%c0_9, %c0_10] : memref<1x128xf32, #tpu.memory_space<vmem>>, vector<1x128xf32>
    %15 = vector.broadcast %14 : vector<1x128xf32> to vector<24x128xf32>
    %16 = arith.addf %13, %15 : vector<24x128xf32>
    %c0_11 = arith.constant 0 : index
    %c0_12 = arith.constant 0 : index
    %17 = vector.load %arg6[%c0_11, %c0_12] : memref<24x128xf32, #tpu.memory_space<vmem>>, vector<24x128xf32>
    tpu.vector_store %arg6[%c0_11, %c0_12], %16 {strides = array<i32>} : memref<24x128xf32, #tpu.memory_space<vmem>>, vector<24x128xf32>,
    return
  }
  func.func @transform_0(%arg0: i32) -> (i32, i32) {
    %c0_i32 = arith.constant 0 : i32
    %c0_i32_0 = arith.constant 0 : i32
    return %arg0, %c0_i32 : i32, i32
  }
  func.func @transform_1(%arg0: i32) -> (i32, i32) {
    %c0_i32 = arith.constant 0 : i32
    %c0_i32_0 = arith.constant 0 : i32
    %c0_i32_1 = arith.constant 0 : i32
    return %c0_i32, %c0_i32_0 : i32, i32
  }
  func.func @transform_2(%arg0: i32) -> (i32, i32) {
    %c0_i32 = arith.constant 0 : i32
    %c0_i32_0 = arith.constant 0 : i32
    %c0_i32_1 = arith.constant 0 : i32
    return %c0_i32, %c0_i32_0 : i32, i32
  }
  func.func @transform_3(%arg0: i32) -> (i32, i32) {
    %c0_i32 = arith.constant 0 : i32
    %c0_i32_0 = arith.constant 0 : i32
    %c0_i32_1 = arith.constant 0 : i32
    return %c0_i32, %c0_i32_0 : i32, i32
  }
  func.func @transform_4(%arg0: i32) -> (i32, i32) {
    %c0_i32 = arith.constant 0 : i32
    %c0_i32_0 = arith.constant 0 : i32
    %c0_i32_1 = arith.constant 0 : i32
    return %c0_i32, %c0_i32_0 : i32, i32
  }
  func.func @transform_5(%arg0: i32) -> (i32, i32) {
    %c0_i32 = arith.constant 0 : i32
    %c0_i32_0 = arith.constant 0 : i32
    return %arg0, %c0_i32 : i32, i32
  }
}

module attributes {stable_mosaic.version = 11 : i64} {
  func.func @ffn_kernel(%arg0: i32, %arg1: memref<24x128xf32, #tpu.memory_space<vmem>>, %arg2: memref<128x512xf32, #tpu.memory_space<vmem>>, %arg3: memref<1x512xf32, #tpu.memory_space<vmem>>, %arg4: memref<512x128xf32, #tpu.memory_space<vmem>>, %arg5: memref<1x128xf32, #tpu.memory_space<vmem>>, %arg6: memref<24x128xf32, #tpu.memory_space<vmem>>) attributes {dimension_semantics = [#tpu.dimension_semantics<parallel>], iteration_bounds = array<i64: 1>, scalar_prefetch = 0 : i64, scratch_operands = 0 : i64, tpu.core_type = #tpu.core_type<tc>, window_params = [{transform_indices = @transform_0, window_bounds = array<i64: 24, 128>}, {pipeline_mode = #tpu.pipeline_mode<synchronous>, transform_indices = @transform_1, window_bounds = array<i64: 128, 512>}, {pipeline_mode = #tpu.pipeline_mode<synchronous>, transform_indices = @transform_2, window_bounds = array<i64: 1, 512>}, {pipeline_mode = #tpu.pipeline_mode<synchronous>, transform_indices = @transform_3, window_bounds = array<i64: 512, 128>}, {pipeline_mode = #tpu.pipeline_mode<synchronous>, transform_indices = @transform_4, window_bounds = array<i64: 1, 128>}, {transform_indices = @transform_5, window_bounds = array<i64: 24, 128>}]} {
    %c0 = arith.constant 0 : index
    %c0_0 = arith.constant 0 : index
    %0 = vector.load %arg1[%c0, %c0_0] : memref<24x128xf32, #tpu.memory_space<vmem>>, vector<24x128xf32>
    %c0_1 = arith.constant 0 : index
    %c0_2 = arith.constant 0 : index
    %1 = vector.load %arg2[%c0_1, %c0_2] : memref<128x512xf32, #tpu.memory_space<vmem>>, vector<128x512xf32>
    %cst = arith.constant dense<0.000000e+00> : vector<24x512xf32>
    %2 = tpu.matmul %0, %1, %cst {dimension_numbers = #tpu.dot_dimension_numbers<[1], [0], [0], [1], [0, 0, 1, 1], [], []>} : vector<24x128xf32>, vector<128x512xf32>, vector<24x512xf32> -> vector<24x512xf32>
    %c0_3 = arith.constant 0 : index
    %c0_4 = arith.constant 0 : index
    %3 = vector.load %arg3[%c0_3, %c0_4] : memref<1x512xf32, #tpu.memory_space<vmem>>, vector<1x512xf32>
    %4 = vector.broadcast %3 : vector<1x512xf32> to vector<24x512xf32>
    %5 = arith.addf %2, %4 : vector<24x512xf32>
    %6 = arith.negf %5 : vector<24x512xf32>
    %7 = math.exp %6 : vector<24x512xf32>
    %cst_5 = arith.constant 1.000000e+00 : f32
    %8 = vector.broadcast %cst_5 : f32 to vector<24x512xf32>
    %9 = arith.addf %8, %7 : vector<24x512xf32>
    %10 = arith.divf %8, %9 : vector<24x512xf32>
    %11 = arith.mulf %5, %10 : vector<24x512xf32>
    %c0_6 = arith.constant 0 : index
    %c0_7 = arith.constant 0 : index
    %12 = vector.load %arg4[%c0_6, %c0_7] : memref<512x128xf32, #tpu.memory_space<vmem>>, vector<512x128xf32>
    %cst_8 = arith.constant dense<0.000000e+00> : vector<24x128xf32>
    %13 = tpu.matmul %11, %12, %cst_8 {dimension_numbers = #tpu.dot_dimension_numbers<[1], [0], [0], [1], [0, 0, 1, 1], [], []>} : vector<24x512xf32>, vector<512x128xf32>, vector<24x128xf32> -> vector<24x128xf32>
    %c0_9 = arith.constant 0 : index
    %c0_10 = arith.constant 0 : index
    %14 = vector.load %arg5[%c0_9, %c0_10] : memref<1x128xf32, #tpu.memory_space<vmem>>, vector<1x128xf32>
    %15 = vector.broadcast %14 : vector<1x128xf32> to vector<24x128xf32>
    %16 = arith.addf %13, %15 : vector<24x128xf32>
    %c0_11 = arith.constant 0 : index
    %c0_12 = arith.constant 0 : index
    %17 = vector.load %arg6[%c0_11, %c0_12] : memref<24x128xf32, #tpu.memory_space<vmem>>, vector<24x128xf32>
    tpu.vector_store %arg6[%c0_11, %c0_12], %16 {strides = array<i32>} : memref<24x128xf32, #tpu.memory_space<vmem>>, vector<24x128xf32>,
    return
  }
  func.func @transform_0(%arg0: i32) -> (i32, i32) {
    %c0_i32 = arith.constant 0 : i32
    %c0_i32_0 = arith.constant 0 : i32
    return %arg0, %c0_i32 : i32, i32
  }
  func.func @transform_1(%arg0: i32) -> (i32, i32) {
    %c0_i32 = arith.constant 0 : i32
    %c0_i32_0 = arith.constant 0 : i32
    %c0_i32_1 = arith.constant 0 : i32
    return %c0_i32, %c0_i32_0 : i32, i32
  }
  func.func @transform_2(%arg0: i32) -> (i32, i32) {
    %c0_i32 = arith.constant 0 : i32
    %c0_i32_0 = arith.constant 0 : i32
    %c0_i32_1 = arith.constant 0 : i32
    return %c0_i32, %c0_i32_0 : i32, i32
  }
  func.func @transform_3(%arg0: i32) -> (i32, i32) {
    %c0_i32 = arith.constant 0 : i32
    %c0_i32_0 = arith.constant 0 : i32
    %c0_i32_1 = arith.constant 0 : i32
    return %c0_i32, %c0_i32_0 : i32, i32
  }
  func.func @transform_4(%arg0: i32) -> (i32, i32) {
    %c0_i32 = arith.constant 0 : i32
    %c0_i32_0 = arith.constant 0 : i32
    %c0_i32_1 = arith.constant 0 : i32
    return %c0_i32, %c0_i32_0 : i32, i32
  }
  func.func @transform_5(%arg0: i32) -> (i32, i32) {
    %c0_i32 = arith.constant 0 : i32
    %c0_i32_0 = arith.constant 0 : i32
    return %arg0, %c0_i32 : i32, i32
  }
}

</mosaic_0001>

<llo_original>
// kernel: tpu_custom_call.1
$region0: #{tpu_custom_call.1}
  #allocation0 [shape = 'u32[]', space=smem, size = 0x4, offset = 0x4, fixed_abs, tag = 'smem constant byte address 0x4 - core index']
  #allocation1 [shape = 'u32[144,128]{1,0:T(1,128)}', space=vmem, size = 0x12000, scoped, tag = 'internal scratch']
  %s0 = inlined_call_operand.hbm [shape: f32[24,128], index: 0, kind: input, shape index: {}]
  %s1 = inlined_call_operand.hbm [shape: f32[128,512], index: 1, kind: input, shape index: {}]
  %s2 = inlined_call_operand.vmem [shape: f32[1,512], index: 2, kind: input, shape index: {}]
  %s3 = inlined_call_operand.hbm [shape: f32[512,128], index: 3, kind: input, shape index: {}]
  %s4 = inlined_call_operand.vmem [shape: f32[1,128], index: 4, kind: input, shape index: {}]
  %s5 = inlined_call_operand.hbm [shape: f32[24,128], index: 5, kind: output, shape index: {}]
  %s6 = sld [smem:[#allocation0]]
  $region42: #{tpu_custom_call.1} parent=0
    _
  %s8 = ssub.s32 1, %s6
  %s9 = scalar_select 0, %s8, %s6
  $region1: #{tpu_custom_call.1} parent=0
    #allocation2 [shape = 'u8[12288]{0}', space=vmem, size = 0x3000, scoped, tag = 'input window, operand 0, single buffered']
    #allocation3 [shape = 's32[1]{0}', space=sflag, size = 0x4, scoped, tag = 'scoped memory for tpu_custom_call.1']
    #allocation4 [shape = 's32[1]{0}', space=sflag, size = 0x4, scoped, tag = 'scoped memory for tpu_custom_call.1']
    #allocation5 [shape = 'u8[262144]{0}', space=vmem, size = 0x40000, scoped, tag = 'input window, operand 1, single buffered']
    #allocation6 [shape = 's32[1]{0}', space=sflag, size = 0x4, scoped, tag = 'scoped memory for tpu_custom_call.1']
    #allocation7 [shape = 'u8[262144]{0}', space=vmem, size = 0x40000, scoped, tag = 'input window, operand 3, single buffered']
    #allocation8 [shape = 'u8[12288]{0}', space=vmem, size = 0x3000, scoped, tag = 'output window, operand 0, single buffered']
    %10 = vsyncpa [#allocation3], 0
    %11 = vsyncpa [#allocation6], 0
    %12 = vsyncpa [#allocation4], 0
    // Predicated region
    $region2: #{tpu_custom_call.1} parent=1 // pred_check
      _
    $region3: #{tpu_custom_call.1} parent=1 // pred_check_branch
      %14 = sbr.rel (0) target = $region5
    $region4: #{tpu_custom_call.1} parent=1 // pred_region
      %s16 = ssub.s32 384, 384
      %17 = vsyncadd [#allocation3], %s16
      %s18 = sshll.u32 [#allocation2], 4
      %s19 = int_to_ptr.vmem [resolvable:$true] %s18
      %24 = dma.hbm_to_vmem [thread:$0]  %s0, 384, %s19, [#allocation3], 128, 128, 8
    $region5: #{tpu_custom_call.1} parent=1 // pred_fallthru
      _
    // Predicated region
    $region6: #{tpu_custom_call.1} parent=1 // pred_check
      _
    $region7: #{tpu_custom_call.1} parent=1 // pred_check_branch
      %26 = sbr.rel (0) target = $region9
    $region8: #{tpu_custom_call.1} parent=1 // pred_region
      %s28 = ssub.s32 8192, 8192
      %29 = vsyncadd [#allocation6], %s28
      %s30 = sshll.u32 [#allocation5], 4
      %s31 = int_to_ptr.vmem [resolvable:$true] %s30
      %36 = dma.hbm_to_vmem [thread:$0]  %s1, 8192, %s31, [#allocation6], 512, 512, 32
    $region9: #{tpu_custom_call.1} parent=1 // pred_fallthru
      _
    // Predicated region
    $region10: #{tpu_custom_call.1} parent=1 // pred_check
      _
    $region11: #{tpu_custom_call.1} parent=1 // pred_check_branch
      %38 = sbr.rel (0) target = $region13
    $region12: #{tpu_custom_call.1} parent=1 // pred_region
      _
    $region13: #{tpu_custom_call.1} parent=1 // pred_fallthru
      _
    // Predicated region
    $region14: #{tpu_custom_call.1} parent=1 // pred_check
      _
    $region15: #{tpu_custom_call.1} parent=1 // pred_check_branch
      %40 = sbr.rel (0) target = $region17
    $region16: #{tpu_custom_call.1} parent=1 // pred_region
      %s42 = ssub.s32 8192, 8192
      %43 = vsyncadd [#allocation6], %s42
      %s44 = sshll.u32 [#allocation7], 4
      %s45 = int_to_ptr.vmem [resolvable:$true] %s44
      %50 = dma.hbm_to_vmem [thread:$0]  %s3, 8192, %s45, [#allocation6], 128, 128, 8
    $region17: #{tpu_custom_call.1} parent=1 // pred_fallthru
      _
    // Predicated region
    $region18: #{tpu_custom_call.1} parent=1 // pred_check
      _
    $region19: #{tpu_custom_call.1} parent=1 // pred_check_branch
      %52 = sbr.rel (0) target = $region21
    $region20: #{tpu_custom_call.1} parent=1 // pred_region
      _
    $region21: #{tpu_custom_call.1} parent=1 // pred_fallthru
      _
    // Predicated region
    $region22: #{tpu_custom_call.1} parent=1 // pred_check
      _
    $region23: #{tpu_custom_call.1} parent=1 // pred_check_branch
      %54 = sbr.rel (0) target = $region25
    $region24: #{tpu_custom_call.1} parent=1 // pred_region
      %55 = dma.done [#allocation3], 384
    $region25: #{tpu_custom_call.1} parent=1 // pred_fallthru
      _
    // Predicated region
    $region26: #{tpu_custom_call.1} parent=1 // pred_check
      _
    $region27: #{tpu_custom_call.1} parent=1 // pred_check_branch
      %57 = sbr.rel (0) target = $region29
    $region28: #{tpu_custom_call.1} parent=1 // pred_region
      %58 = dma.done [#allocation6], 8192
    $region29: #{tpu_custom_call.1} parent=1 // pred_fallthru
      _
    // Predicated region
    $region30: #{tpu_custom_call.1} parent=1 // pred_check
      _
    $region31: #{tpu_custom_call.1} parent=1 // pred_check_branch
      %60 = sbr.rel (0) target = $region33
    $region32: #{tpu_custom_call.1} parent=1 // pred_region
      %61 = dma.done [#allocation6], 8192
    $region33: #{tpu_custom_call.1} parent=1 // pred_fallthru
      _
    %v62 = vld [vmem:[#allocation2] sm:$0xff]
    %v63 = vld [vmem:[#allocation2 + $0x8] sm:$0xff]
    %v64 = vld [vmem:[#allocation2 + $0x10] sm:$0xff]
    %v65 = vld [vmem:[#allocation5] sm:$0xff]
    %v66 = vld [vmem:[#allocation5 + $0x8] sm:$0xff]
    %v67 = vld [vmem:[#allocation5 + $0x10] sm:$0xff]
    %v68 = vld [vmem:[#allocation5 + $0x18] sm:$0xff]
    %v69 = vld [vmem:[#allocation5 + $0x20] sm:$0xff]
    %v70 = vld [vmem:[#allocation5 + $0x28] sm:$0xff]
    %v71 = vld [vmem:[#allocation5 + $0x30] sm:$0xff]
    %v72 = vld [vmem:[#allocation5 + $0x38] sm:$0xff]
    %v73 = vld [vmem:[#allocation5 + $0x40] sm:$0xff]
    %v74 = vld [vmem:[#allocation5 + $0x48] sm:$0xff]
    %v75 = vld [vmem:[#allocation5 + $0x50] sm:$0xff]
    %v76 = vld [vmem:[#allocation5 + $0x58] sm:$0xff]
    %v77 = vld [vmem:[#allocation5 + $0x60] sm:$0xff]
    %v78 = vld [vmem:[#allocation5 + $0x68] sm:$0xff]
    %v79 = vld [vmem:[#allocation5 + $0x70] sm:$0xff]
    %v80 = vld [vmem:[#allocation5 + $0x78] sm:$0xff]
    %v81 = vld [vmem:[#allocation5 + $0x80] sm:$0xff]
    %v82 = vld [vmem:[#allocation5 + $0x88] sm:$0xff]
    %v83 = vld [vmem:[#allocation5 + $0x90] sm:$0xff]
    %v84 = vld [vmem:[#allocation5 + $0x98] sm:$0xff]
    %v85 = vld [vmem:[#allocation5 + $0xa0] sm:$0xff]
    %v86 = vld [vmem:[#allocation5 + $0xa8] sm:$0xff]
    %v87 = vld [vmem:[#allocation5 + $0xb0] sm:$0xff]
    %v88 = vld [vmem:[#allocation5 + $0xb8] sm:$0xff]
    %v89 = vld [vmem:[#allocation5 + $0xc0] sm:$0xff]
    %v90 = vld [vmem:[#allocation5 + $0xc8] sm:$0xff]
    %v91 = vld [vmem:[#allocation5 + $0xd0] sm:$0xff]
    %v92 = vld [vmem:[#allocation5 + $0xd8] sm:$0xff]
    %v93 = vld [vmem:[#allocation5 + $0xe0] sm:$0xff]
    %v94 = vld [vmem:[#allocation5 + $0xe8] sm:$0xff]
    %v95 = vld [vmem:[#allocation5 + $0xf0] sm:$0xff]
    %v96 = vld [vmem:[#allocation5 + $0xf8] sm:$0xff]
    %v97 = vld [vmem:[#allocation5 + $0x100] sm:$0xff]
    %v98 = vld [vmem:[#allocation5 + $0x108] sm:$0xff]
    %v99 = vld [vmem:[#allocation5 + $0x110] sm:$0xff]
    %v100 = vld [vmem:[#allocation5 + $0x118] sm:$0xff]
    %v101 = vld [vmem:[#allocation5 + $0x120] sm:$0xff]
    %v102 = vld [vmem:[#allocation5 + $0x128] sm:$0xff]
    %v103 = vld [vmem:[#allocation5 + $0x130] sm:$0xff]
    %v104 = vld [vmem:[#allocation5 + $0x138] sm:$0xff]
    %v105 = vld [vmem:[#allocation5 + $0x140] sm:$0xff]
    %v106 = vld [vmem:[#allocation5 + $0x148] sm:$0xff]
    %v107 = vld [vmem:[#allocation5 + $0x150] sm:$0xff]
    %v108 = vld [vmem:[#allocation5 + $0x158] sm:$0xff]
    %v109 = vld [vmem:[#allocation5 + $0x160] sm:$0xff]
    %v110 = vld [vmem:[#allocation5 + $0x168] sm:$0xff]
    %v111 = vld [vmem:[#allocation5 + $0x170] sm:$0xff]
    %v112 = vld [vmem:[#allocation5 + $0x178] sm:$0xff]
    %v113 = vld [vmem:[#allocation5 + $0x180] sm:$0xff]
    %v114 = vld [vmem:[#allocation5 + $0x188] sm:$0xff]
    %v115 = vld [vmem:[#allocation5 + $0x190] sm:$0xff]
    %v116 = vld [vmem:[#allocation5 + $0x198] sm:$0xff]
    %v117 = vld [vmem:[#allocation5 + $0x1a0] sm:$0xff]
    %v118 = vld [vmem:[#allocation5 + $0x1a8] sm:$0xff]
    %v119 = vld [vmem:[#allocation5 + $0x1b0] sm:$0xff]
    %v120 = vld [vmem:[#allocation5 + $0x1b8] sm:$0xff]
    %v121 = vld [vmem:[#allocation5 + $0x1c0] sm:$0xff]
    %v122 = vld [vmem:[#allocation5 + $0x1c8] sm:$0xff]
    %v123 = vld [vmem:[#allocation5 + $0x1d0] sm:$0xff]
    %v124 = vld [vmem:[#allocation5 + $0x1d8] sm:$0xff]
    %v125 = vld [vmem:[#allocation5 + $0x1e0] sm:$0xff]
    %v126 = vld [vmem:[#allocation5 + $0x1e8] sm:$0xff]
    %v127 = vld [vmem:[#allocation5 + $0x1f0] sm:$0xff]
    %v128 = vld [vmem:[#allocation5 + $0x1f8] sm:$0xff]
    %v129 = vld [vmem:[%s2] sm:$0xf]
    %v131 = vlaneseq
    %v132 = vshrl.u32 %v131, 7
    %v133 = vsub.s32 0, %v132
    %v134 = vrot.slane %v129, %v133
    %v135 = vlaneseq
    %v136 = vshrl.u32 %v135, 7
    %v137 = vsub.s32 1, %v136
    %v138 = vrot.slane %v129, %v137
    %v139 = vlaneseq
    %v140 = vshrl.u32 %v139, 7
    %v141 = vsub.s32 2, %v140
    %v142 = vrot.slane %v129, %v141
    %v143 = vlaneseq
    %v144 = vshrl.u32 %v143, 7
    %v145 = vsub.s32 3, %v144
    %v146 = vrot.slane %v129, %v145
    %151 = vmatprep.subr.mxu0 %v66
    %152 = vmatpush1.msra.mxu0 %v65
    %153 = vmatprep.subr.mxu0 %v70
    %154 = vmatpush1.msra.mxu0 %v69
    %155 = vmatprep.subr.mxu0 %v74
    %156 = vmatpush1.msra.mxu0 %v73
    %157 = vmatprep.subr.mxu0 %v78
    %158 = vmatpush1.msra.mxu0 %v77
    %159 = vmatprep.subr.mxu0 %v82
    %160 = vmatpush1.msra.mxu0 %v81
    %161 = vmatprep.subr.mxu0 %v86
    %162 = vmatpush1.msra.mxu0 %v85
    %163 = vmatprep.subr.mxu0 %v90
    %164 = vmatpush1.msra.mxu0 %v89
    %165 = vmatprep.subr.mxu0 %v94
    %166 = vmatpush1.msra.mxu0 %v93
    %167 = vmatprep.subr.mxu0 %v98
    %168 = vmatpush1.msra.mxu0 %v97
    %169 = vmatprep.subr.mxu0 %v102
    %170 = vmatpush1.msra.mxu0 %v101
    %171 = vmatprep.subr.mxu0 %v106
    %172 = vmatpush1.msra.mxu0 %v105
    %173 = vmatprep.subr.mxu0 %v110
    %174 = vmatpush1.msra.mxu0 %v109
    %175 = vmatprep.subr.mxu0 %v114
    %176 = vmatpush1.msra.mxu0 %v113
    %177 = vmatprep.subr.mxu0 %v118
    %178 = vmatpush1.msra.mxu0 %v117
    %179 = vmatprep.subr.mxu0 %v122
    %180 = vmatpush1.msra.mxu0 %v121
    %181 = vmatprep.subr.mxu0 %v126
    %182 = vmatpush1.msra.mxu0 %v125
    %183 = vmatprep.subr.mxu0 0.0
    %184 = vmatpush1.msra.mxu0 0.0
    %185 = vmatprep.subr.mxu0 0.0
    %186 = vmatpush1.msra.mxu0 0.0
    %187 = vmatprep.subr.mxu0 0.0
    %188 = vmatpush1.msra.mxu0 0.0
    %189 = vmatprep.subr.mxu0 0.0
    %190 = vmatpush1.msra.mxu0 0.0
    %191 = vmatprep.subr.mxu0 0.0
    %192 = vmatpush1.msra.mxu0 0.0
    %193 = vmatprep.subr.mxu0 0.0
    %194 = vmatpush1.msra.mxu0 0.0
    %195 = vmatprep.subr.mxu0 0.0
    %196 = vmatpush1.msra.mxu0 0.0
    %197 = vmatprep.subr.mxu0 0.0
    %198 = vmatpush1.msra.mxu0 0.0
    %199 = vmatprep.subr.mxu0 0.0
    %200 = vmatpush1.msra.mxu0 0.0
    %201 = vmatprep.subr.mxu0 0.0
    %202 = vmatpush1.msra.mxu0 0.0
    %203 = vmatprep.subr.mxu0 0.0
    %204 = vmatpush1.msra.mxu0 0.0
    %205 = vmatprep.subr.mxu0 0.0
    %206 = vmatpush1.msra.mxu0 0.0
    %207 = vmatprep.subr.mxu0 0.0
    %208 = vmatpush1.msra.mxu0 0.0
    %209 = vmatprep.subr.mxu0 0.0
    %210 = vmatpush1.msra.mxu0 0.0
    %211 = vmatprep.subr.mxu0 0.0
    %212 = vmatpush1.msra.mxu0 0.0
    %213 = vmatprep.subr.mxu0 0.0
    %214 = vmatpush1.msra.mxu0 0.0
    %215 = vmatprep.mubr.f32.mxu0 0.0
    %216 = vmatmul.mubr.f32.gmra.mrb[0].mxu0 %v62
    %v217 = vpop.f32.mrb[0].mxu0
    %v218 = vadd.f32 %v134, %v217
    %v219 = vpop.f32.mrb[0].mxu0
    %v220 = vadd.f32 %v138, %v219
    %221 = vmatprep.mubr.f32.mxu0 0.0
    %222 = vmatmul.mubr.f32.gmra.mrb[0].mxu0 %v63
    %v223 = vpop.f32.mrb[0].mxu0
    %v224 = vadd.f32 %v134, %v223
    %v225 = vpop.f32.mrb[0].mxu0
    %v226 = vadd.f32 %v138, %v225
    %227 = vmatprep.mubr.f32.mxu0 0.0
    %228 = vmatmul.mubr.f32.gmra.mrb[0].mxu0 %v64
    %v229 = vpop.f32.mrb[0].mxu0
    %v230 = vadd.f32 %v134, %v229
    %v231 = vpop.f32.mrb[0].mxu0
    %v232 = vadd.f32 %v138, %v231
    %233 = vdwg.mxu0
    %234 = vmatprep.subr.mxu0 %v68
    %235 = vmatpush1.msra.mxu0 %v67
    %236 = vmatprep.subr.mxu0 %v72
    %237 = vmatpush1.msra.mxu0 %v71
    %238 = vmatprep.subr.mxu0 %v76
    %239 = vmatpush1.msra.mxu0 %v75
    %240 = vmatprep.subr.mxu0 %v80
    %241 = vmatpush1.msra.mxu0 %v79
    %242 = vmatprep.subr.mxu0 %v84
    %243 = vmatpush1.msra.mxu0 %v83
    %244 = vmatprep.subr.mxu0 %v88
    %245 = vmatpush1.msra.mxu0 %v87
    %246 = vmatprep.subr.mxu0 %v92
    %247 = vmatpush1.msra.mxu0 %v91
    %248 = vmatprep.subr.mxu0 %v96
    %249 = vmatpush1.msra.mxu0 %v95
    %250 = vmatprep.subr.mxu0 %v100
    %251 = vmatpush1.msra.mxu0 %v99
    %252 = vmatprep.subr.mxu0 %v104
    %253 = vmatpush1.msra.mxu0 %v103
    %254 = vmatprep.subr.mxu0 %v108
    %255 = vmatpush1.msra.mxu0 %v107
    %256 = vmatprep.subr.mxu0 %v112
    %257 = vmatpush1.msra.mxu0 %v111
    %258 = vmatprep.subr.mxu0 %v116
    %259 = vmatpush1.msra.mxu0 %v115
    %260 = vmatprep.subr.mxu0 %v120
    %261 = vmatpush1.msra.mxu0 %v119
    %262 = vmatprep.subr.mxu0 %v124
    %263 = vmatpush1.msra.mxu0 %v123
    %264 = vmatprep.subr.mxu0 %v128
    %265 = vmatpush1.msra.mxu0 %v127
    %266 = vmatprep.subr.mxu0 0.0
    %267 = vmatpush1.msra.mxu0 0.0
    %268 = vmatprep.subr.mxu0 0.0
    %269 = vmatpush1.msra.mxu0 0.0
    %270 = vmatprep.subr.mxu0 0.0
    %271 = vmatpush1.msra.mxu0 0.0
    %272 = vmatprep.subr.mxu0 0.0
    %273 = vmatpush1.msra.mxu0 0.0
    %274 = vmatprep.subr.mxu0 0.0
    %275 = vmatpush1.msra.mxu0 0.0
    %276 = vmatprep.subr.mxu0 0.0
    %277 = vmatpush1.msra.mxu0 0.0
    %278 = vmatprep.subr.mxu0 0.0
    %279 = vmatpush1.msra.mxu0 0.0
    %280 = vmatprep.subr.mxu0 0.0
    %281 = vmatpush1.msra.mxu0 0.0
    %282 = vmatprep.subr.mxu0 0.0
    %283 = vmatpush1.msra.mxu0 0.0
    %284 = vmatprep.subr.mxu0 0.0
    %285 = vmatpush1.msra.mxu0 0.0
    %286 = vmatprep.subr.mxu0 0.0
    %287 = vmatpush1.msra.mxu0 0.0
    %288 = vmatprep.subr.mxu0 0.0
    %289 = vmatpush1.msra.mxu0 0.0
    %290 = vmatprep.subr.mxu0 0.0
    %291 = vmatpush1.msra.mxu0 0.0
    %292 = vmatprep.subr.mxu0 0.0
    %293 = vmatpush1.msra.mxu0 0.0
    %294 = vmatprep.subr.mxu0 0.0
    %295 = vmatpush1.msra.mxu0 0.0
    %296 = vmatprep.subr.mxu0 0.0
    %297 = vmatpush1.msra.mxu0 0.0
    %298 = vmatprep.mubr.f32.mxu0 0.0
    %299 = vmatmul.mubr.f32.gmra.mrb[0].mxu0 %v62
    %v300 = vpop.f32.mrb[0].mxu0
    %v301 = vadd.f32 %v142, %v300
    %v302 = vpop.f32.mrb[0].mxu0
    %v303 = vadd.f32 %v146, %v302
    %304 = vmatprep.mubr.f32.mxu0 0.0
    %305 = vmatmul.mubr.f32.gmra.mrb[0].mxu0 %v63
    %v306 = vpop.f32.mrb[0].mxu0
    %v307 = vadd.f32 %v142, %v306
    %v308 = vpop.f32.mrb[0].mxu0
    %v309 = vadd.f32 %v146, %v308
    %310 = vmatprep.mubr.f32.mxu0 0.0
    %311 = vmatmul.mubr.f32.gmra.mrb[0].mxu0 %v64
    %v312 = vpop.f32.mrb[0].mxu0
    %v313 = vadd.f32 %v142, %v312
    %v314 = vpop.f32.mrb[0].mxu0
    %v315 = vadd.f32 %v146, %v314
    %316 = vdwg.mxu0
    %v317 = vxor.u32 %v218, 2147483648
    %v318 = vxor.u32 %v220, 2147483648
    %v319 = vxor.u32 %v301, 2147483648
    %v320 = vxor.u32 %v303, 2147483648
    %v321 = vxor.u32 %v224, 2147483648
    %v322 = vxor.u32 %v226, 2147483648
    %v323 = vxor.u32 %v307, 2147483648
    %v324 = vxor.u32 %v309, 2147483648
    %v325 = vxor.u32 %v230, 2147483648
    %v326 = vxor.u32 %v232, 2147483648
    %v327 = vxor.u32 %v313, 2147483648
    %v328 = vxor.u32 %v315, 2147483648
    %v329 = vmul.f32 %v317, 1.442695
    %v330 = vpow.pop %v329
    %v331 = vmul.f32 %v318, 1.442695
    %v332 = vpow.pop %v331
    %v333 = vmul.f32 %v319, 1.442695
    %v334 = vpow.pop %v333
    %v335 = vmul.f32 %v320, 1.442695
    %v336 = vpow.pop %v335
    %v337 = vmul.f32 %v321, 1.442695
    %v338 = vpow.pop %v337
    %v339 = vmul.f32 %v322, 1.442695
    %v340 = vpow.pop %v339
    %v341 = vmul.f32 %v323, 1.442695
    %v342 = vpow.pop %v341
    %v343 = vmul.f32 %v324, 1.442695
    %v344 = vpow.pop %v343
    %v345 = vmul.f32 %v325, 1.442695
    %v346 = vpow.pop %v345
    %v347 = vmul.f32 %v326, 1.442695
    %v348 = vpow.pop %v347
    %v349 = vmul.f32 %v327, 1.442695
    %v350 = vpow.pop %v349
    %v351 = vmul.f32 %v328, 1.442695
    %v352 = vpow.pop %v351
    %v353 = vadd.f32 %v330, 1.0
    %v354 = vadd.f32 %v332, 1.0
    %v355 = vadd.f32 %v334, 1.0
    %v356 = vadd.f32 %v336, 1.0
    %v357 = vadd.f32 %v338, 1.0
    %v358 = vadd.f32 %v340, 1.0
    %v359 = vadd.f32 %v342, 1.0
    %v360 = vadd.f32 %v344, 1.0
    %v361 = vadd.f32 %v346, 1.0
    %v362 = vadd.f32 %v348, 1.0
    %v363 = vadd.f32 %v350, 1.0
    %v364 = vadd.f32 %v352, 1.0
    %v365 = vrcp.pop %v353
    %v366 = vmul.f32 1.0, %v365
    %v367 = vrcp.pop %v354
    %v368 = vmul.f32 1.0, %v367
    %v369 = vrcp.pop %v355
    %v370 = vmul.f32 1.0, %v369
    %v371 = vrcp.pop %v356
    %v372 = vmul.f32 1.0, %v371
    %v373 = vrcp.pop %v357
    %v374 = vmul.f32 1.0, %v373
    %v375 = vrcp.pop %v358
    %v376 = vmul.f32 1.0, %v375
    %v377 = vrcp.pop %v359
    %v378 = vmul.f32 1.0, %v377
    %v379 = vrcp.pop %v360
    %v380 = vmul.f32 1.0, %v379
    %v381 = vrcp.pop %v361
    %v382 = vmul.f32 1.0, %v381
    %v383 = vrcp.pop %v362
    %v384 = vmul.f32 1.0, %v383
    %v385 = vrcp.pop %v363
    %v386 = vmul.f32 1.0, %v385
    %v387 = vrcp.pop %v364
    %v388 = vmul.f32 1.0, %v387
    %v389 = vmul.f32 %v218, %v366
    %v390 = vmul.f32 %v220, %v368
    %v391 = vmul.f32 %v301, %v370
    %v392 = vmul.f32 %v303, %v372
    %v393 = vmul.f32 %v224, %v374
    %v394 = vmul.f32 %v226, %v376
    %v395 = vmul.f32 %v307, %v378
    %v396 = vmul.f32 %v309, %v380
    %v397 = vmul.f32 %v230, %v382
    %v398 = vmul.f32 %v232, %v384
    %v399 = vmul.f32 %v313, %v386
    %v400 = vmul.f32 %v315, %v388
    %v401 = vld [vmem:[#allocation7] sm:$0xff]
    %v402 = vld [vmem:[#allocation7 + $0x8] sm:$0xff]
    %v403 = vld [vmem:[#allocation7 + $0x10] sm:$0xff]
    %v404 = vld [vmem:[#allocation7 + $0x18] sm:$0xff]
    %v405 = vld [vmem:[#allocation7 + $0x20] sm:$0xff]
    %v406 = vld [vmem:[#allocation7 + $0x28] sm:$0xff]
    %v407 = vld [vmem:[#allocation7 + $0x30] sm:$0xff]
    %v408 = vld [vmem:[#allocation7 + $0x38] sm:$0xff]
    %v409 = vld [vmem:[#allocation7 + $0x40] sm:$0xff]
    %v410 = vld [vmem:[#allocation7 + $0x48] sm:$0xff]
    %v411 = vld [vmem:[#allocation7 + $0x50] sm:$0xff]
    %v412 = vld [vmem:[#allocation7 + $0x58] sm:$0xff]
    %v413 = vld [vmem:[#allocation7 + $0x60] sm:$0xff]
    %v414 = vld [vmem:[#allocation7 + $0x68] sm:$0xff]
    %v415 = vld [vmem:[#allocation7 + $0x70] sm:$0xff]
    %v416 = vld [vmem:[#allocation7 + $0x78] sm:$0xff]
    %v417 = vld [vmem:[#allocation7 + $0x80] sm:$0xff]
    %v418 = vld [vmem:[#allocation7 + $0x88] sm:$0xff]
    %v419 = vld [vmem:[#allocation7 + $0x90] sm:$0xff]
    %v420 = vld [vmem:[#allocation7 + $0x98] sm:$0xff]
    %v421 = vld [vmem:[#allocation7 + $0xa0] sm:$0xff]
    %v422 = vld [vmem:[#allocation7 + $0xa8] sm:$0xff]
    %v423 = vld [vmem:[#allocation7 + $0xb0] sm:$0xff]
    %v424 = vld [vmem:[#allocation7 + $0xb8] sm:$0xff]
    %v425 = vld [vmem:[#allocation7 + $0xc0] sm:$0xff]
    %v426 = vld [vmem:[#allocation7 + $0xc8] sm:$0xff]
    %v427 = vld [vmem:[#allocation7 + $0xd0] sm:$0xff]
    %v428 = vld [vmem:[#allocation7 + $0xd8] sm:$0xff]
    %v429 = vld [vmem:[#allocation7 + $0xe0] sm:$0xff]
    %v430 = vld [vmem:[#allocation7 + $0xe8] sm:$0xff]
    %v431 = vld [vmem:[#allocation7 + $0xf0] sm:$0xff]
    %v432 = vld [vmem:[#allocation7 + $0xf8] sm:$0xff]
    %v433 = vld [vmem:[#allocation7 + $0x100] sm:$0xff]
    %v434 = vld [vmem:[#allocation7 + $0x108] sm:$0xff]
    %v435 = vld [vmem:[#allocation7 + $0x110] sm:$0xff]
    %v436 = vld [vmem:[#allocation7 + $0x118] sm:$0xff]
    %v437 = vld [vmem:[#allocation7 + $0x120] sm:$0xff]
    %v438 = vld [vmem:[#allocation7 + $0x128] sm:$0xff]
    %v439 = vld [vmem:[#allocation7 + $0x130] sm:$0xff]
    %v440 = vld [vmem:[#allocation7 + $0x138] sm:$0xff]
    %v441 = vld [vmem:[#allocation7 + $0x140] sm:$0xff]
    %v442 = vld [vmem:[#allocation7 + $0x148] sm:$0xff]
    %v443 = vld [vmem:[#allocation7 + $0x150] sm:$0xff]
    %v444 = vld [vmem:[#allocation7 + $0x158] sm:$0xff]
    %v445 = vld [vmem:[#allocation7 + $0x160] sm:$0xff]
    %v446 = vld [vmem:[#allocation7 + $0x168] sm:$0xff]
    %v447 = vld [vmem:[#allocation7 + $0x170] sm:$0xff]
    %v448 = vld [vmem:[#allocation7 + $0x178] sm:$0xff]
    %v449 = vld [vmem:[#allocation7 + $0x180] sm:$0xff]
    %v450 = vld [vmem:[#allocation7 + $0x188] sm:$0xff]
    %v451 = vld [vmem:[#allocation7 + $0x190] sm:$0xff]
    %v452 = vld [vmem:[#allocation7 + $0x198] sm:$0xff]
    %v453 = vld [vmem:[#allocation7 + $0x1a0] sm:$0xff]
    %v454 = vld [vmem:[#allocation7 + $0x1a8] sm:$0xff]
    %v455 = vld [vmem:[#allocation7 + $0x1b0] sm:$0xff]
    %v456 = vld [vmem:[#allocation7 + $0x1b8] sm:$0xff]
    %v457 = vld [vmem:[#allocation7 + $0x1c0] sm:$0xff]
    %v458 = vld [vmem:[#allocation7 + $0x1c8] sm:$0xff]
    %v459 = vld [vmem:[#allocation7 + $0x1d0] sm:$0xff]
    %v460 = vld [vmem:[#allocation7 + $0x1d8] sm:$0xff]
    %v461 = vld [vmem:[#allocation7 + $0x1e0] sm:$0xff]
    %v462 = vld [vmem:[#allocation7 + $0x1e8] sm:$0xff]
    %v463 = vld [vmem:[#allocation7 + $0x1f0] sm:$0xff]
    %v464 = vld [vmem:[#allocation7 + $0x1f8] sm:$0xff]
    %v465 = vld [vmem:[%s4] sm:$0x1]
    %v467 = vlaneseq
    %v468 = vshrl.u32 %v467, 7
    %v469 = vsub.s32 0, %v468
    %v470 = vrot.slane %v465, %v469
    %472 = vmatprep.subr.mxu0 0.0
    %473 = vmatpush1.msra.mxu0 %v401
    %474 = vmatprep.subr.mxu0 0.0
    %475 = vmatpush1.msra.mxu0 %v402
    %476 = vmatprep.subr.mxu0 0.0
    %477 = vmatpush1.msra.mxu0 %v403
    %478 = vmatprep.subr.mxu0 0.0
    %479 = vmatpush1.msra.mxu0 %v404
    %480 = vmatprep.subr.mxu0 0.0
    %481 = vmatpush1.msra.mxu0 %v405
    %482 = vmatprep.subr.mxu0 0.0
    %483 = vmatpush1.msra.mxu0 %v406
    %484 = vmatprep.subr.mxu0 0.0
    %485 = vmatpush1.msra.mxu0 %v407
    %486 = vmatprep.subr.mxu0 0.0
    %487 = vmatpush1.msra.mxu0 %v408
    %488 = vmatprep.subr.mxu0 0.0
    %489 = vmatpush1.msra.mxu0 %v409
    %490 = vmatprep.subr.mxu0 0.0
    %491 = vmatpush1.msra.mxu0 %v410
    %492 = vmatprep.subr.mxu0 0.0
    %493 = vmatpush1.msra.mxu0 %v411
    %494 = vmatprep.subr.mxu0 0.0
    %495 = vmatpush1.msra.mxu0 %v412
    %496 = vmatprep.subr.mxu0 0.0
    %497 = vmatpush1.msra.mxu0 %v413
    %498 = vmatprep.subr.mxu0 0.0
    %499 = vmatpush1.msra.mxu0 %v414
    %500 = vmatprep.subr.mxu0 0.0
    %501 = vmatpush1.msra.mxu0 %v415
    %502 = vmatprep.subr.mxu0 0.0
    %503 = vmatpush1.msra.mxu0 %v416
    %504 = vmatprep.subr.mxu0 0.0
    %505 = vmatpush1.msra.mxu0 %v417
    %506 = vmatprep.subr.mxu0 0.0
    %507 = vmatpush1.msra.mxu0 %v418
    %508 = vmatprep.subr.mxu0 0.0
    %509 = vmatpush1.msra.mxu0 %v419
    %510 = vmatprep.subr.mxu0 0.0
    %511 = vmatpush1.msra.mxu0 %v420
    %512 = vmatprep.subr.mxu0 0.0
    %513 = vmatpush1.msra.mxu0 %v421
    %514 = vmatprep.subr.mxu0 0.0
    %515 = vmatpush1.msra.mxu0 %v422
    %516 = vmatprep.subr.mxu0 0.0
    %517 = vmatpush1.msra.mxu0 %v423
    %518 = vmatprep.subr.mxu0 0.0
    %519 = vmatpush1.msra.mxu0 %v424
    %520 = vmatprep.subr.mxu0 0.0
    %521 = vmatpush1.msra.mxu0 %v425
    %522 = vmatprep.subr.mxu0 0.0
    %523 = vmatpush1.msra.mxu0 %v426
    %524 = vmatprep.subr.mxu0 0.0
    %525 = vmatpush1.msra.mxu0 %v427
    %526 = vmatprep.subr.mxu0 0.0
    %527 = vmatpush1.msra.mxu0 %v428
    %528 = vmatprep.subr.mxu0 0.0
    %529 = vmatpush1.msra.mxu0 %v429
    %530 = vmatprep.subr.mxu0 0.0
    %531 = vmatpush1.msra.mxu0 %v430
    %532 = vmatprep.subr.mxu0 0.0
    %533 = vmatpush1.msra.mxu0 %v431
    %534 = vmatprep.subr.mxu0 0.0
    %535 = vmatpush1.msra.mxu0 %v432
    %536 = vmatprep.mubr.f32.mxu0 %v390
    %537 = vmatmul.mubr.f32.gmra.mrb[0].mxu0 %v389
    %v538 = vpop.f32.mrb[0].mxu0
    %v539 = vadd.f32 %v470, %v538
    %v540 = vpop.f32.mrb[0].mxu0
    %541 = vmatprep.mubr.f32.mxu0 %v394
    %542 = vmatmul.mubr.f32.gmra.mrb[0].mxu0 %v393
    %v543 = vpop.f32.mrb[0].mxu0
    %v544 = vadd.f32 %v470, %v543
    %v545 = vpop.f32.mrb[0].mxu0
    %546 = vmatprep.mubr.f32.mxu0 %v398
    %547 = vmatmul.mubr.f32.gmra.mrb[0].mxu0 %v397
    %v548 = vpop.f32.mrb[0].mxu0
    %v549 = vadd.f32 %v470, %v548
    %v550 = vpop.f32.mrb[0].mxu0
    %551 = vdwg.mxu0
    %552 = vmatprep.subr.mxu0 0.0
    %553 = vmatpush1.msra.mxu0 %v433
    %554 = vmatprep.subr.mxu0 0.0
    %555 = vmatpush1.msra.mxu0 %v434
    %556 = vmatprep.subr.mxu0 0.0
    %557 = vmatpush1.msra.mxu0 %v435
    %558 = vmatprep.subr.mxu0 0.0
    %559 = vmatpush1.msra.mxu0 %v436
    %560 = vmatprep.subr.mxu0 0.0
    %561 = vmatpush1.msra.mxu0 %v437
    %562 = vmatprep.subr.mxu0 0.0
    %563 = vmatpush1.msra.mxu0 %v438
    %564 = vmatprep.subr.mxu0 0.0
    %565 = vmatpush1.msra.mxu0 %v439
    %566 = vmatprep.subr.mxu0 0.0
    %567 = vmatpush1.msra.mxu0 %v440
    %568 = vmatprep.subr.mxu0 0.0
    %569 = vmatpush1.msra.mxu0 %v441
    %570 = vmatprep.subr.mxu0 0.0
    %571 = vmatpush1.msra.mxu0 %v442
    %572 = vmatprep.subr.mxu0 0.0
    %573 = vmatpush1.msra.mxu0 %v443
    %574 = vmatprep.subr.mxu0 0.0
    %575 = vmatpush1.msra.mxu0 %v444
    %576 = vmatprep.subr.mxu0 0.0
    %577 = vmatpush1.msra.mxu0 %v445
    %578 = vmatprep.subr.mxu0 0.0
    %579 = vmatpush1.msra.mxu0 %v446
    %580 = vmatprep.subr.mxu0 0.0
    %581 = vmatpush1.msra.mxu0 %v447
    %582 = vmatprep.subr.mxu0 0.0
    %583 = vmatpush1.msra.mxu0 %v448
    %584 = vmatprep.subr.mxu0 0.0
    %585 = vmatpush1.msra.mxu0 %v449
    %586 = vmatprep.subr.mxu0 0.0
    %587 = vmatpush1.msra.mxu0 %v450
    %588 = vmatprep.subr.mxu0 0.0
    %589 = vmatpush1.msra.mxu0 %v451
    %590 = vmatprep.subr.mxu0 0.0
    %591 = vmatpush1.msra.mxu0 %v452
    %592 = vmatprep.subr.mxu0 0.0
    %593 = vmatpush1.msra.mxu0 %v453
    %594 = vmatprep.subr.mxu0 0.0
    %595 = vmatpush1.msra.mxu0 %v454
    %596 = vmatprep.subr.mxu0 0.0
    %597 = vmatpush1.msra.mxu0 %v455
    %598 = vmatprep.subr.mxu0 0.0
    %599 = vmatpush1.msra.mxu0 %v456
    %600 = vmatprep.subr.mxu0 0.0
    %601 = vmatpush1.msra.mxu0 %v457
    %602 = vmatprep.subr.mxu0 0.0
    %603 = vmatpush1.msra.mxu0 %v458
    %604 = vmatprep.subr.mxu0 0.0
    %605 = vmatpush1.msra.mxu0 %v459
    %606 = vmatprep.subr.mxu0 0.0
    %607 = vmatpush1.msra.mxu0 %v460
    %608 = vmatprep.subr.mxu0 0.0
    %609 = vmatpush1.msra.mxu0 %v461
    %610 = vmatprep.subr.mxu0 0.0
    %611 = vmatpush1.msra.mxu0 %v462
    %612 = vmatprep.subr.mxu0 0.0
    %613 = vmatpush1.msra.mxu0 %v463
    %614 = vmatprep.subr.mxu0 0.0
    %615 = vmatpush1.msra.mxu0 %v464
    %616 = vmatprep.mubr.f32.mxu0 %v392
    %617 = vmatmul.mubr.f32.gmra.mrb[0].mxu0 %v391
    %v618 = vpop.f32.mrb[0].mxu0
    %v619 = vadd.f32 %v539, %v618
    %v620 = vpop.f32.mrb[0].mxu0
    %621 = vmatprep.mubr.f32.mxu0 %v396
    %622 = vmatmul.mubr.f32.gmra.mrb[0].mxu0 %v395
    %v623 = vpop.f32.mrb[0].mxu0
    %v624 = vadd.f32 %v544, %v623
    %v625 = vpop.f32.mrb[0].mxu0
    %626 = vmatprep.mubr.f32.mxu0 %v400
    %627 = vmatmul.mubr.f32.gmra.mrb[0].mxu0 %v399
    %v628 = vpop.f32.mrb[0].mxu0
    %v629 = vadd.f32 %v549, %v628
    %v630 = vpop.f32.mrb[0].mxu0
    %631 = vdwg.mxu0
    %632 = vst [vmem:[#allocation8] sm:$0xff] %v619
    %633 = vst [vmem:[#allocation8 + $0x8] sm:$0xff] %v624
    %634 = vst [vmem:[#allocation8 + $0x10] sm:$0xff] %v629
    // Predicated region
    $region34: #{tpu_custom_call.1} parent=1 // pred_check
      _
    $region35: #{tpu_custom_call.1} parent=1 // pred_check_branch
      %636 = sbr.rel (0) target = $region37
    $region36: #{tpu_custom_call.1} parent=1 // pred_region
      %s638 = ssub.s32 384, 384
      %639 = vsyncadd [#allocation4], %s638
      %s640 = sshll.u32 [#allocation8], 4
      %s641 = int_to_ptr.vmem [resolvable:$true] %s640
      %646 = dma.vmem_to_hbm [thread:$0]  %s641, 384, %s5, [#allocation4], 128, 128, 8
    $region37: #{tpu_custom_call.1} parent=1 // pred_fallthru
      _
    // Predicated region
    $region38: #{tpu_custom_call.1} parent=1 // pred_check
      _
    $region39: #{tpu_custom_call.1} parent=1 // pred_check_branch
      %648 = sbr.rel (0) target = $region41
    $region40: #{tpu_custom_call.1} parent=1 // pred_region
      %649 = dma.done [#allocation4], 384
    $region41: #{tpu_custom_call.1} parent=1 // pred_fallthru
      _
    %650 = vsyncpa [#allocation3], 1
    %651 = vsyncpa [#allocation6], 1
    %652 = vsyncpa [#allocation4], 1

// kernel: tpu_custom_call.1
$region0: #{tpu_custom_call.1}
  #allocation0 [shape = 'u32[]', space=smem, size = 0x4, offset = 0x4, fixed_abs, tag = 'smem constant byte address 0x4 - core index']
  #allocation1 [shape = 'u32[144,128]{1,0:T(1,128)}', space=vmem, size = 0x12000, scoped, tag = 'internal scratch']
  %s0 = inlined_call_operand.hbm [shape: f32[24,128], index: 0, kind: input, shape index: {}]
  %s1 = inlined_call_operand.hbm [shape: f32[128,512], index: 1, kind: input, shape index: {}]
  %s2 = inlined_call_operand.vmem [shape: f32[1,512], index: 2, kind: input, shape index: {}]
  %s3 = inlined_call_operand.hbm [shape: f32[512,128], index: 3, kind: input, shape index: {}]
  %s4 = inlined_call_operand.vmem [shape: f32[1,128], index: 4, kind: input, shape index: {}]
  %s5 = inlined_call_operand.hbm [shape: f32[24,128], index: 5, kind: output, shape index: {}]
  %s6 = sld [smem:[#allocation0]]
  $region42: #{tpu_custom_call.1} parent=0
    _
  %s8 = ssub.s32 1, %s6
  %s9 = scalar_select 0, %s8, %s6
  $region1: #{tpu_custom_call.1} parent=0
    #allocation2 [shape = 'u8[12288]{0}', space=vmem, size = 0x3000, scoped, tag = 'input window, operand 0, single buffered']
    #allocation3 [shape = 's32[1]{0}', space=sflag, size = 0x4, scoped, tag = 'scoped memory for tpu_custom_call.1']
    #allocation4 [shape = 's32[1]{0}', space=sflag, size = 0x4, scoped, tag = 'scoped memory for tpu_custom_call.1']
    #allocation5 [shape = 'u8[262144]{0}', space=vmem, size = 0x40000, scoped, tag = 'input window, operand 1, single buffered']
    #allocation6 [shape = 's32[1]{0}', space=sflag, size = 0x4, scoped, tag = 'scoped memory for tpu_custom_call.1']
    #allocation7 [shape = 'u8[262144]{0}', space=vmem, size = 0x40000, scoped, tag = 'input window, operand 3, single buffered']
    #allocation8 [shape = 'u8[12288]{0}', space=vmem, size = 0x3000, scoped, tag = 'output window, operand 0, single buffered']
    %10 = vsyncpa [#allocation3], 0
    %11 = vsyncpa [#allocation6], 0
    %12 = vsyncpa [#allocation4], 0
    // Predicated region
    $region2: #{tpu_custom_call.1} parent=1 // pred_check
      _
    $region3: #{tpu_custom_call.1} parent=1 // pred_check_branch
      %14 = sbr.rel (0) target = $region5
    $region4: #{tpu_custom_call.1} parent=1 // pred_region
      %s16 = ssub.s32 384, 384
      %17 = vsyncadd [#allocation3], %s16
      %s18 = sshll.u32 [#allocation2], 4
      %s19 = int_to_ptr.vmem [resolvable:$true] %s18
      %24 = dma.hbm_to_vmem [thread:$0]  %s0, 384, %s19, [#allocation3], 128, 128, 8
    $region5: #{tpu_custom_call.1} parent=1 // pred_fallthru
      _
    // Predicated region
    $region6: #{tpu_custom_call.1} parent=1 // pred_check
      _
    $region7: #{tpu_custom_call.1} parent=1 // pred_check_branch
      %26 = sbr.rel (0) target = $region9
    $region8: #{tpu_custom_call.1} parent=1 // pred_region
      %s28 = ssub.s32 8192, 8192
      %29 = vsyncadd [#allocation6], %s28
      %s30 = sshll.u32 [#allocation5], 4
      %s31 = int_to_ptr.vmem [resolvable:$true] %s30
      %36 = dma.hbm_to_vmem [thread:$0]  %s1, 8192, %s31, [#allocation6], 512, 512, 32
    $region9: #{tpu_custom_call.1} parent=1 // pred_fallthru
      _
    // Predicated region
    $region10: #{tpu_custom_call.1} parent=1 // pred_check
      _
    $region11: #{tpu_custom_call.1} parent=1 // pred_check_branch
      %38 = sbr.rel (0) target = $region13
    $region12: #{tpu_custom_call.1} parent=1 // pred_region
      _
    $region13: #{tpu_custom_call.1} parent=1 // pred_fallthru
      _
    // Predicated region
    $region14: #{tpu_custom_call.1} parent=1 // pred_check
      _
    $region15: #{tpu_custom_call.1} parent=1 // pred_check_branch
      %40 = sbr.rel (0) target = $region17
    $region16: #{tpu_custom_call.1} parent=1 // pred_region
      %s42 = ssub.s32 8192, 8192
      %43 = vsyncadd [#allocation6], %s42
      %s44 = sshll.u32 [#allocation7], 4
      %s45 = int_to_ptr.vmem [resolvable:$true] %s44
      %50 = dma.hbm_to_vmem [thread:$0]  %s3, 8192, %s45, [#allocation6], 128, 128, 8
    $region17: #{tpu_custom_call.1} parent=1 // pred_fallthru
      _
    // Predicated region
    $region18: #{tpu_custom_call.1} parent=1 // pred_check
      _
    $region19: #{tpu_custom_call.1} parent=1 // pred_check_branch
      %52 = sbr.rel (0) target = $region21
    $region20: #{tpu_custom_call.1} parent=1 // pred_region
      _
    $region21: #{tpu_custom_call.1} parent=1 // pred_fallthru
      _
    // Predicated region
    $region22: #{tpu_custom_call.1} parent=1 // pred_check
      _
    $region23: #{tpu_custom_call.1} parent=1 // pred_check_branch
      %54 = sbr.rel (0) target = $region25
    $region24: #{tpu_custom_call.1} parent=1 // pred_region
      %55 = dma.done [#allocation3], 384
    $region25: #{tpu_custom_call.1} parent=1 // pred_fallthru
      _
    // Predicated region
    $region26: #{tpu_custom_call.1} parent=1 // pred_check
      _
    $region27: #{tpu_custom_call.1} parent=1 // pred_check_branch
      %57 = sbr.rel (0) target = $region29
    $region28: #{tpu_custom_call.1} parent=1 // pred_region
      %58 = dma.done [#allocation6], 8192
    $region29: #{tpu_custom_call.1} parent=1 // pred_fallthru
      _
    // Predicated region
    $region30: #{tpu_custom_call.1} parent=1 // pred_check
      _
    $region31: #{tpu_custom_call.1} parent=1 // pred_check_branch
      %60 = sbr.rel (0) target = $region33
    $region32: #{tpu_custom_call.1} parent=1 // pred_region
      %61 = dma.done [#allocation6], 8192
    $region33: #{tpu_custom_call.1} parent=1 // pred_fallthru
      _
    %v62 = vld [vmem:[#allocation2] sm:$0xff]
    %v63 = vld [vmem:[#allocation2 + $0x8] sm:$0xff]
    %v64 = vld [vmem:[#allocation2 + $0x10] sm:$0xff]
    %v65 = vld [vmem:[#allocation5] sm:$0xff]
    %v66 = vld [vmem:[#allocation5 + $0x8] sm:$0xff]
    %v67 = vld [vmem:[#allocation5 + $0x10] sm:$0xff]
    %v68 = vld [vmem:[#allocation5 + $0x18] sm:$0xff]
    %v69 = vld [vmem:[#allocation5 + $0x20] sm:$0xff]
    %v70 = vld [vmem:[#allocation5 + $0x28] sm:$0xff]
    %v71 = vld [vmem:[#allocation5 + $0x30] sm:$0xff]
    %v72 = vld [vmem:[#allocation5 + $0x38] sm:$0xff]
    %v73 = vld [vmem:[#allocation5 + $0x40] sm:$0xff]
    %v74 = vld [vmem:[#allocation5 + $0x48] sm:$0xff]
    %v75 = vld [vmem:[#allocation5 + $0x50] sm:$0xff]
    %v76 = vld [vmem:[#allocation5 + $0x58] sm:$0xff]
    %v77 = vld [vmem:[#allocation5 + $0x60] sm:$0xff]
    %v78 = vld [vmem:[#allocation5 + $0x68] sm:$0xff]
    %v79 = vld [vmem:[#allocation5 + $0x70] sm:$0xff]
    %v80 = vld [vmem:[#allocation5 + $0x78] sm:$0xff]
    %v81 = vld [vmem:[#allocation5 + $0x80] sm:$0xff]
    %v82 = vld [vmem:[#allocation5 + $0x88] sm:$0xff]
    %v83 = vld [vmem:[#allocation5 + $0x90] sm:$0xff]
    %v84 = vld [vmem:[#allocation5 + $0x98] sm:$0xff]
    %v85 = vld [vmem:[#allocation5 + $0xa0] sm:$0xff]
    %v86 = vld [vmem:[#allocation5 + $0xa8] sm:$0xff]
    %v87 = vld [vmem:[#allocation5 + $0xb0] sm:$0xff]
    %v88 = vld [vmem:[#allocation5 + $0xb8] sm:$0xff]
    %v89 = vld [vmem:[#allocation5 + $0xc0] sm:$0xff]
    %v90 = vld [vmem:[#allocation5 + $0xc8] sm:$0xff]
    %v91 = vld [vmem:[#allocation5 + $0xd0] sm:$0xff]
    %v92 = vld [vmem:[#allocation5 + $0xd8] sm:$0xff]
    %v93 = vld [vmem:[#allocation5 + $0xe0] sm:$0xff]
    %v94 = vld [vmem:[#allocation5 + $0xe8] sm:$0xff]
    %v95 = vld [vmem:[#allocation5 + $0xf0] sm:$0xff]
    %v96 = vld [vmem:[#allocation5 + $0xf8] sm:$0xff]
    %v97 = vld [vmem:[#allocation5 + $0x100] sm:$0xff]
    %v98 = vld [vmem:[#allocation5 + $0x108] sm:$0xff]
    %v99 = vld [vmem:[#allocation5 + $0x110] sm:$0xff]
    %v100 = vld [vmem:[#allocation5 + $0x118] sm:$0xff]
    %v101 = vld [vmem:[#allocation5 + $0x120] sm:$0xff]
    %v102 = vld [vmem:[#allocation5 + $0x128] sm:$0xff]
    %v103 = vld [vmem:[#allocation5 + $0x130] sm:$0xff]
    %v104 = vld [vmem:[#allocation5 + $0x138] sm:$0xff]
    %v105 = vld [vmem:[#allocation5 + $0x140] sm:$0xff]
    %v106 = vld [vmem:[#allocation5 + $0x148] sm:$0xff]
    %v107 = vld [vmem:[#allocation5 + $0x150] sm:$0xff]
    %v108 = vld [vmem:[#allocation5 + $0x158] sm:$0xff]
    %v109 = vld [vmem:[#allocation5 + $0x160] sm:$0xff]
    %v110 = vld [vmem:[#allocation5 + $0x168] sm:$0xff]
    %v111 = vld [vmem:[#allocation5 + $0x170] sm:$0xff]
    %v112 = vld [vmem:[#allocation5 + $0x178] sm:$0xff]
    %v113 = vld [vmem:[#allocation5 + $0x180] sm:$0xff]
    %v114 = vld [vmem:[#allocation5 + $0x188] sm:$0xff]
    %v115 = vld [vmem:[#allocation5 + $0x190] sm:$0xff]
    %v116 = vld [vmem:[#allocation5 + $0x198] sm:$0xff]
    %v117 = vld [vmem:[#allocation5 + $0x1a0] sm:$0xff]
    %v118 = vld [vmem:[#allocation5 + $0x1a8] sm:$0xff]
    %v119 = vld [vmem:[#allocation5 + $0x1b0] sm:$0xff]
    %v120 = vld [vmem:[#allocation5 + $0x1b8] sm:$0xff]
    %v121 = vld [vmem:[#allocation5 + $0x1c0] sm:$0xff]
    %v122 = vld [vmem:[#allocation5 + $0x1c8] sm:$0xff]
    %v123 = vld [vmem:[#allocation5 + $0x1d0] sm:$0xff]
    %v124 = vld [vmem:[#allocation5 + $0x1d8] sm:$0xff]
    %v125 = vld [vmem:[#allocation5 + $0x1e0] sm:$0xff]
    %v126 = vld [vmem:[#allocation5 + $0x1e8] sm:$0xff]
    %v127 = vld [vmem:[#allocation5 + $0x1f0] sm:$0xff]
    %v128 = vld [vmem:[#allocation5 + $0x1f8] sm:$0xff]
    %v129 = vld [vmem:[%s2] sm:$0xf]
    %v131 = vlaneseq
    %v132 = vshrl.u32 %v131, 7
    %v133 = vsub.s32 0, %v132
    %v134 = vrot.slane %v129, %v133
    %v135 = vlaneseq
    %v136 = vshrl.u32 %v135, 7
    %v137 = vsub.s32 1, %v136
    %v138 = vrot.slane %v129, %v137
    %v139 = vlaneseq
    %v140 = vshrl.u32 %v139, 7
    %v141 = vsub.s32 2, %v140
    %v142 = vrot.slane %v129, %v141
    %v143 = vlaneseq
    %v144 = vshrl.u32 %v143, 7
    %v145 = vsub.s32 3, %v144
    %v146 = vrot.slane %v129, %v145
    %151 = vmatprep.subr.mxu0 %v66
    %152 = vmatpush1.msra.mxu0 %v65
    %153 = vmatprep.subr.mxu0 %v70
    %154 = vmatpush1.msra.mxu0 %v69
    %155 = vmatprep.subr.mxu0 %v74
    %156 = vmatpush1.msra.mxu0 %v73
    %157 = vmatprep.subr.mxu0 %v78
    %158 = vmatpush1.msra.mxu0 %v77
    %159 = vmatprep.subr.mxu0 %v82
    %160 = vmatpush1.msra.mxu0 %v81
    %161 = vmatprep.subr.mxu0 %v86
    %162 = vmatpush1.msra.mxu0 %v85
    %163 = vmatprep.subr.mxu0 %v90
    %164 = vmatpush1.msra.mxu0 %v89
    %165 = vmatprep.subr.mxu0 %v94
    %166 = vmatpush1.msra.mxu0 %v93
    %167 = vmatprep.subr.mxu0 %v98
    %168 = vmatpush1.msra.mxu0 %v97
    %169 = vmatprep.subr.mxu0 %v102
    %170 = vmatpush1.msra.mxu0 %v101
    %171 = vmatprep.subr.mxu0 %v106
    %172 = vmatpush1.msra.mxu0 %v105
    %173 = vmatprep.subr.mxu0 %v110
    %174 = vmatpush1.msra.mxu0 %v109
    %175 = vmatprep.subr.mxu0 %v114
    %176 = vmatpush1.msra.mxu0 %v113
    %177 = vmatprep.subr.mxu0 %v118
    %178 = vmatpush1.msra.mxu0 %v117
    %179 = vmatprep.subr.mxu0 %v122
    %180 = vmatpush1.msra.mxu0 %v121
    %181 = vmatprep.subr.mxu0 %v126
    %182 = vmatpush1.msra.mxu0 %v125
    %183 = vmatprep.subr.mxu0 0.0
    %184 = vmatpush1.msra.mxu0 0.0
    %185 = vmatprep.subr.mxu0 0.0
    %186 = vmatpush1.msra.mxu0 0.0
    %187 = vmatprep.subr.mxu0 0.0
    %188 = vmatpush1.msra.mxu0 0.0
    %189 = vmatprep.subr.mxu0 0.0
    %190 = vmatpush1.msra.mxu0 0.0
    %191 = vmatprep.subr.mxu0 0.0
    %192 = vmatpush1.msra.mxu0 0.0
    %193 = vmatprep.subr.mxu0 0.0
    %194 = vmatpush1.msra.mxu0 0.0
    %195 = vmatprep.subr.mxu0 0.0
    %196 = vmatpush1.msra.mxu0 0.0
    %197 = vmatprep.subr.mxu0 0.0
    %198 = vmatpush1.msra.mxu0 0.0
    %199 = vmatprep.subr.mxu0 0.0
    %200 = vmatpush1.msra.mxu0 0.0
    %201 = vmatprep.subr.mxu0 0.0
    %202 = vmatpush1.msra.mxu0 0.0
    %203 = vmatprep.subr.mxu0 0.0
    %204 = vmatpush1.msra.mxu0 0.0
    %205 = vmatprep.subr.mxu0 0.0
    %206 = vmatpush1.msra.mxu0 0.0
    %207 = vmatprep.subr.mxu0 0.0
    %208 = vmatpush1.msra.mxu0 0.0
    %209 = vmatprep.subr.mxu0 0.0
    %210 = vmatpush1.msra.mxu0 0.0
    %211 = vmatprep.subr.mxu0 0.0
    %212 = vmatpush1.msra.mxu0 0.0
    %213 = vmatprep.subr.mxu0 0.0
    %214 = vmatpush1.msra.mxu0 0.0
    %215 = vmatprep.mubr.f32.mxu0 0.0
    %216 = vmatmul.mubr.f32.gmra.mrb[0].mxu0 %v62
    %v217 = vpop.f32.mrb[0].mxu0
    %v218 = vadd.f32 %v134, %v217
    %v219 = vpop.f32.mrb[0].mxu0
    %v220 = vadd.f32 %v138, %v219
    %221 = vmatprep.mubr.f32.mxu0 0.0
    %222 = vmatmul.mubr.f32.gmra.mrb[0].mxu0 %v63
    %v223 = vpop.f32.mrb[0].mxu0
    %v224 = vadd.f32 %v134, %v223
    %v225 = vpop.f32.mrb[0].mxu0
    %v226 = vadd.f32 %v138, %v225
    %227 = vmatprep.mubr.f32.mxu0 0.0
    %228 = vmatmul.mubr.f32.gmra.mrb[0].mxu0 %v64
    %v229 = vpop.f32.mrb[0].mxu0
    %v230 = vadd.f32 %v134, %v229
    %v231 = vpop.f32.mrb[0].mxu0
    %v232 = vadd.f32 %v138, %v231
    %233 = vdwg.mxu0
    %234 = vmatprep.subr.mxu0 %v68
    %235 = vmatpush1.msra.mxu0 %v67
    %236 = vmatprep.subr.mxu0 %v72
    %237 = vmatpush1.msra.mxu0 %v71
    %238 = vmatprep.subr.mxu0 %v76
    %239 = vmatpush1.msra.mxu0 %v75
    %240 = vmatprep.subr.mxu0 %v80
    %241 = vmatpush1.msra.mxu0 %v79
    %242 = vmatprep.subr.mxu0 %v84
    %243 = vmatpush1.msra.mxu0 %v83
    %244 = vmatprep.subr.mxu0 %v88
    %245 = vmatpush1.msra.mxu0 %v87
    %246 = vmatprep.subr.mxu0 %v92
    %247 = vmatpush1.msra.mxu0 %v91
    %248 = vmatprep.subr.mxu0 %v96
    %249 = vmatpush1.msra.mxu0 %v95
    %250 = vmatprep.subr.mxu0 %v100
    %251 = vmatpush1.msra.mxu0 %v99
    %252 = vmatprep.subr.mxu0 %v104
    %253 = vmatpush1.msra.mxu0 %v103
    %254 = vmatprep.subr.mxu0 %v108
    %255 = vmatpush1.msra.mxu0 %v107
    %256 = vmatprep.subr.mxu0 %v112
    %257 = vmatpush1.msra.mxu0 %v111
    %258 = vmatprep.subr.mxu0 %v116
    %259 = vmatpush1.msra.mxu0 %v115
    %260 = vmatprep.subr.mxu0 %v120
    %261 = vmatpush1.msra.mxu0 %v119
    %262 = vmatprep.subr.mxu0 %v124
    %263 = vmatpush1.msra.mxu0 %v123
    %264 = vmatprep.subr.mxu0 %v128
    %265 = vmatpush1.msra.mxu0 %v127
    %266 = vmatprep.subr.mxu0 0.0
    %267 = vmatpush1.msra.mxu0 0.0
    %268 = vmatprep.subr.mxu0 0.0
    %269 = vmatpush1.msra.mxu0 0.0
    %270 = vmatprep.subr.mxu0 0.0
    %271 = vmatpush1.msra.mxu0 0.0
    %272 = vmatprep.subr.mxu0 0.0
    %273 = vmatpush1.msra.mxu0 0.0
    %274 = vmatprep.subr.mxu0 0.0
    %275 = vmatpush1.msra.mxu0 0.0
    %276 = vmatprep.subr.mxu0 0.0
    %277 = vmatpush1.msra.mxu0 0.0
    %278 = vmatprep.subr.mxu0 0.0
    %279 = vmatpush1.msra.mxu0 0.0
    %280 = vmatprep.subr.mxu0 0.0
    %281 = vmatpush1.msra.mxu0 0.0
    %282 = vmatprep.subr.mxu0 0.0
    %283 = vmatpush1.msra.mxu0 0.0
    %284 = vmatprep.subr.mxu0 0.0
    %285 = vmatpush1.msra.mxu0 0.0
    %286 = vmatprep.subr.mxu0 0.0
    %287 = vmatpush1.msra.mxu0 0.0
    %288 = vmatprep.subr.mxu0 0.0
    %289 = vmatpush1.msra.mxu0 0.0
    %290 = vmatprep.subr.mxu0 0.0
    %291 = vmatpush1.msra.mxu0 0.0
    %292 = vmatprep.subr.mxu0 0.0
    %293 = vmatpush1.msra.mxu0 0.0
    %294 = vmatprep.subr.mxu0 0.0
    %295 = vmatpush1.msra.mxu0 0.0
    %296 = vmatprep.subr.mxu0 0.0
    %297 = vmatpush1.msra.mxu0 0.0
    %298 = vmatprep.mubr.f32.mxu0 0.0
    %299 = vmatmul.mubr.f32.gmra.mrb[0].mxu0 %v62
    %v300 = vpop.f32.mrb[0].mxu0
    %v301 = vadd.f32 %v142, %v300
    %v302 = vpop.f32.mrb[0].mxu0
    %v303 = vadd.f32 %v146, %v302
    %304 = vmatprep.mubr.f32.mxu0 0.0
    %305 = vmatmul.mubr.f32.gmra.mrb[0].mxu0 %v63
    %v306 = vpop.f32.mrb[0].mxu0
    %v307 = vadd.f32 %v142, %v306
    %v308 = vpop.f32.mrb[0].mxu0
    %v309 = vadd.f32 %v146, %v308
    %310 = vmatprep.mubr.f32.mxu0 0.0
    %311 = vmatmul.mubr.f32.gmra.mrb[0].mxu0 %v64
    %v312 = vpop.f32.mrb[0].mxu0
    %v313 = vadd.f32 %v142, %v312
    %v314 = vpop.f32.mrb[0].mxu0
    %v315 = vadd.f32 %v146, %v314
    %316 = vdwg.mxu0
    %v317 = vxor.u32 %v218, 2147483648
    %v318 = vxor.u32 %v220, 2147483648
    %v319 = vxor.u32 %v301, 2147483648
    %v320 = vxor.u32 %v303, 2147483648
    %v321 = vxor.u32 %v224, 2147483648
    %v322 = vxor.u32 %v226, 2147483648
    %v323 = vxor.u32 %v307, 2147483648
    %v324 = vxor.u32 %v309, 2147483648
    %v325 = vxor.u32 %v230, 2147483648
    %v326 = vxor.u32 %v232, 2147483648
    %v327 = vxor.u32 %v313, 2147483648
    %v328 = vxor.u32 %v315, 2147483648
    %v329 = vmul.f32 %v317, 1.442695
    %v330 = vpow.pop %v329
    %v331 = vmul.f32 %v318, 1.442695
    %v332 = vpow.pop %v331
    %v333 = vmul.f32 %v319, 1.442695
    %v334 = vpow.pop %v333
    %v335 = vmul.f32 %v320, 1.442695
    %v336 = vpow.pop %v335
    %v337 = vmul.f32 %v321, 1.442695
    %v338 = vpow.pop %v337
    %v339 = vmul.f32 %v322, 1.442695
    %v340 = vpow.pop %v339
    %v341 = vmul.f32 %v323, 1.442695
    %v342 = vpow.pop %v341
    %v343 = vmul.f32 %v324, 1.442695
    %v344 = vpow.pop %v343
    %v345 = vmul.f32 %v325, 1.442695
    %v346 = vpow.pop %v345
    %v347 = vmul.f32 %v326, 1.442695
    %v348 = vpow.pop %v347
    %v349 = vmul.f32 %v327, 1.442695
    %v350 = vpow.pop %v349
    %v351 = vmul.f32 %v328, 1.442695
    %v352 = vpow.pop %v351
    %v353 = vadd.f32 %v330, 1.0
    %v354 = vadd.f32 %v332, 1.0
    %v355 = vadd.f32 %v334, 1.0
    %v356 = vadd.f32 %v336, 1.0
    %v357 = vadd.f32 %v338, 1.0
    %v358 = vadd.f32 %v340, 1.0
    %v359 = vadd.f32 %v342, 1.0
    %v360 = vadd.f32 %v344, 1.0
    %v361 = vadd.f32 %v346, 1.0
    %v362 = vadd.f32 %v348, 1.0
    %v363 = vadd.f32 %v350, 1.0
    %v364 = vadd.f32 %v352, 1.0
    %v365 = vrcp.pop %v353
    %v366 = vmul.f32 1.0, %v365
    %v367 = vrcp.pop %v354
    %v368 = vmul.f32 1.0, %v367
    %v369 = vrcp.pop %v355
    %v370 = vmul.f32 1.0, %v369
    %v371 = vrcp.pop %v356
    %v372 = vmul.f32 1.0, %v371
    %v373 = vrcp.pop %v357
    %v374 = vmul.f32 1.0, %v373
    %v375 = vrcp.pop %v358
    %v376 = vmul.f32 1.0, %v375
    %v377 = vrcp.pop %v359
    %v378 = vmul.f32 1.0, %v377
    %v379 = vrcp.pop %v360
    %v380 = vmul.f32 1.0, %v379
    %v381 = vrcp.pop %v361
    %v382 = vmul.f32 1.0, %v381
    %v383 = vrcp.pop %v362
    %v384 = vmul.f32 1.0, %v383
    %v385 = vrcp.pop %v363
    %v386 = vmul.f32 1.0, %v385
    %v387 = vrcp.pop %v364
    %v388 = vmul.f32 1.0, %v387
    %v389 = vmul.f32 %v218, %v366
    %v390 = vmul.f32 %v220, %v368
    %v391 = vmul.f32 %v301, %v370
    %v392 = vmul.f32 %v303, %v372
    %v393 = vmul.f32 %v224, %v374
    %v394 = vmul.f32 %v226, %v376
    %v395 = vmul.f32 %v307, %v378
    %v396 = vmul.f32 %v309, %v380
    %v397 = vmul.f32 %v230, %v382
    %v398 = vmul.f32 %v232, %v384
    %v399 = vmul.f32 %v313, %v386
    %v400 = vmul.f32 %v315, %v388
    %v401 = vld [vmem:[#allocation7] sm:$0xff]
    %v402 = vld [vmem:[#allocation7 + $0x8] sm:$0xff]
    %v403 = vld [vmem:[#allocation7 + $0x10] sm:$0xff]
    %v404 = vld [vmem:[#allocation7 + $0x18] sm:$0xff]
    %v405 = vld [vmem:[#allocation7 + $0x20] sm:$0xff]
    %v406 = vld [vmem:[#allocation7 + $0x28] sm:$0xff]
    %v407 = vld [vmem:[#allocation7 + $0x30] sm:$0xff]
    %v408 = vld [vmem:[#allocation7 + $0x38] sm:$0xff]
    %v409 = vld [vmem:[#allocation7 + $0x40] sm:$0xff]
    %v410 = vld [vmem:[#allocation7 + $0x48] sm:$0xff]
    %v411 = vld [vmem:[#allocation7 + $0x50] sm:$0xff]
    %v412 = vld [vmem:[#allocation7 + $0x58] sm:$0xff]
    %v413 = vld [vmem:[#allocation7 + $0x60] sm:$0xff]
    %v414 = vld [vmem:[#allocation7 + $0x68] sm:$0xff]
    %v415 = vld [vmem:[#allocation7 + $0x70] sm:$0xff]
    %v416 = vld [vmem:[#allocation7 + $0x78] sm:$0xff]
    %v417 = vld [vmem:[#allocation7 + $0x80] sm:$0xff]
    %v418 = vld [vmem:[#allocation7 + $0x88] sm:$0xff]
    %v419 = vld [vmem:[#allocation7 + $0x90] sm:$0xff]
    %v420 = vld [vmem:[#allocation7 + $0x98] sm:$0xff]
    %v421 = vld [vmem:[#allocation7 + $0xa0] sm:$0xff]
    %v422 = vld [vmem:[#allocation7 + $0xa8] sm:$0xff]
    %v423 = vld [vmem:[#allocation7 + $0xb0] sm:$0xff]
    %v424 = vld [vmem:[#allocation7 + $0xb8] sm:$0xff]
    %v425 = vld [vmem:[#allocation7 + $0xc0] sm:$0xff]
    %v426 = vld [vmem:[#allocation7 + $0xc8] sm:$0xff]
    %v427 = vld [vmem:[#allocation7 + $0xd0] sm:$0xff]
    %v428 = vld [vmem:[#allocation7 + $0xd8] sm:$0xff]
    %v429 = vld [vmem:[#allocation7 + $0xe0] sm:$0xff]
    %v430 = vld [vmem:[#allocation7 + $0xe8] sm:$0xff]
    %v431 = vld [vmem:[#allocation7 + $0xf0] sm:$0xff]
    %v432 = vld [vmem:[#allocation7 + $0xf8] sm:$0xff]
    %v433 = vld [vmem:[#allocation7 + $0x100] sm:$0xff]
    %v434 = vld [vmem:[#allocation7 + $0x108] sm:$0xff]
    %v435 = vld [vmem:[#allocation7 + $0x110] sm:$0xff]
    %v436 = vld [vmem:[#allocation7 + $0x118] sm:$0xff]
    %v437 = vld [vmem:[#allocation7 + $0x120] sm:$0xff]
    %v438 = vld [vmem:[#allocation7 + $0x128] sm:$0xff]
    %v439 = vld [vmem:[#allocation7 + $0x130] sm:$0xff]
    %v440 = vld [vmem:[#allocation7 + $0x138] sm:$0xff]
    %v441 = vld [vmem:[#allocation7 + $0x140] sm:$0xff]
    %v442 = vld [vmem:[#allocation7 + $0x148] sm:$0xff]
    %v443 = vld [vmem:[#allocation7 + $0x150] sm:$0xff]
    %v444 = vld [vmem:[#allocation7 + $0x158] sm:$0xff]
    %v445 = vld [vmem:[#allocation7 + $0x160] sm:$0xff]
    %v446 = vld [vmem:[#allocation7 + $0x168] sm:$0xff]
    %v447 = vld [vmem:[#allocation7 + $0x170] sm:$0xff]
    %v448 = vld [vmem:[#allocation7 + $0x178] sm:$0xff]
    %v449 = vld [vmem:[#allocation7 + $0x180] sm:$0xff]
    %v450 = vld [vmem:[#allocation7 + $0x188] sm:$0xff]
    %v451 = vld [vmem:[#allocation7 + $0x190] sm:$0xff]
    %v452 = vld [vmem:[#allocation7 + $0x198] sm:$0xff]
    %v453 = vld [vmem:[#allocation7 + $0x1a0] sm:$0xff]
    %v454 = vld [vmem:[#allocation7 + $0x1a8] sm:$0xff]
    %v455 = vld [vmem:[#allocation7 + $0x1b0] sm:$0xff]
    %v456 = vld [vmem:[#allocation7 + $0x1b8] sm:$0xff]
    %v457 = vld [vmem:[#allocation7 + $0x1c0] sm:$0xff]
    %v458 = vld [vmem:[#allocation7 + $0x1c8] sm:$0xff]
    %v459 = vld [vmem:[#allocation7 + $0x1d0] sm:$0xff]
    %v460 = vld [vmem:[#allocation7 + $0x1d8] sm:$0xff]
    %v461 = vld [vmem:[#allocation7 + $0x1e0] sm:$0xff]
    %v462 = vld [vmem:[#allocation7 + $0x1e8] sm:$0xff]
    %v463 = vld [vmem:[#allocation7 + $0x1f0] sm:$0xff]
    %v464 = vld [vmem:[#allocation7 + $0x1f8] sm:$0xff]
    %v465 = vld [vmem:[%s4] sm:$0x1]
    %v467 = vlaneseq
    %v468 = vshrl.u32 %v467, 7
    %v469 = vsub.s32 0, %v468
    %v470 = vrot.slane %v465, %v469
    %472 = vmatprep.subr.mxu0 0.0
    %473 = vmatpush1.msra.mxu0 %v401
    %474 = vmatprep.subr.mxu0 0.0
    %475 = vmatpush1.msra.mxu0 %v402
    %476 = vmatprep.subr.mxu0 0.0
    %477 = vmatpush1.msra.mxu0 %v403
    %478 = vmatprep.subr.mxu0 0.0
    %479 = vmatpush1.msra.mxu0 %v404
    %480 = vmatprep.subr.mxu0 0.0
    %481 = vmatpush1.msra.mxu0 %v405
    %482 = vmatprep.subr.mxu0 0.0
    %483 = vmatpush1.msra.mxu0 %v406
    %484 = vmatprep.subr.mxu0 0.0
    %485 = vmatpush1.msra.mxu0 %v407
    %486 = vmatprep.subr.mxu0 0.0
    %487 = vmatpush1.msra.mxu0 %v408
    %488 = vmatprep.subr.mxu0 0.0
    %489 = vmatpush1.msra.mxu0 %v409
    %490 = vmatprep.subr.mxu0 0.0
    %491 = vmatpush1.msra.mxu0 %v410
    %492 = vmatprep.subr.mxu0 0.0
    %493 = vmatpush1.msra.mxu0 %v411
    %494 = vmatprep.subr.mxu0 0.0
    %495 = vmatpush1.msra.mxu0 %v412
    %496 = vmatprep.subr.mxu0 0.0
    %497 = vmatpush1.msra.mxu0 %v413
    %498 = vmatprep.subr.mxu0 0.0
    %499 = vmatpush1.msra.mxu0 %v414
    %500 = vmatprep.subr.mxu0 0.0
    %501 = vmatpush1.msra.mxu0 %v415
    %502 = vmatprep.subr.mxu0 0.0
    %503 = vmatpush1.msra.mxu0 %v416
    %504 = vmatprep.subr.mxu0 0.0
    %505 = vmatpush1.msra.mxu0 %v417
    %506 = vmatprep.subr.mxu0 0.0
    %507 = vmatpush1.msra.mxu0 %v418
    %508 = vmatprep.subr.mxu0 0.0
    %509 = vmatpush1.msra.mxu0 %v419
    %510 = vmatprep.subr.mxu0 0.0
    %511 = vmatpush1.msra.mxu0 %v420
    %512 = vmatprep.subr.mxu0 0.0
    %513 = vmatpush1.msra.mxu0 %v421
    %514 = vmatprep.subr.mxu0 0.0
    %515 = vmatpush1.msra.mxu0 %v422
    %516 = vmatprep.subr.mxu0 0.0
    %517 = vmatpush1.msra.mxu0 %v423
    %518 = vmatprep.subr.mxu0 0.0
    %519 = vmatpush1.msra.mxu0 %v424
    %520 = vmatprep.subr.mxu0 0.0
    %521 = vmatpush1.msra.mxu0 %v425
    %522 = vmatprep.subr.mxu0 0.0
    %523 = vmatpush1.msra.mxu0 %v426
    %524 = vmatprep.subr.mxu0 0.0
    %525 = vmatpush1.msra.mxu0 %v427
    %526 = vmatprep.subr.mxu0 0.0
    %527 = vmatpush1.msra.mxu0 %v428
    %528 = vmatprep.subr.mxu0 0.0
    %529 = vmatpush1.msra.mxu0 %v429
    %530 = vmatprep.subr.mxu0 0.0
    %531 = vmatpush1.msra.mxu0 %v430
    %532 = vmatprep.subr.mxu0 0.0
    %533 = vmatpush1.msra.mxu0 %v431
    %534 = vmatprep.subr.mxu0 0.0
    %535 = vmatpush1.msra.mxu0 %v432
    %536 = vmatprep.mubr.f32.mxu0 %v390
    %537 = vmatmul.mubr.f32.gmra.mrb[0].mxu0 %v389
    %v538 = vpop.f32.mrb[0].mxu0
    %v539 = vadd.f32 %v470, %v538
    %v540 = vpop.f32.mrb[0].mxu0
    %541 = vmatprep.mubr.f32.mxu0 %v394
    %542 = vmatmul.mubr.f32.gmra.mrb[0].mxu0 %v393
    %v543 = vpop.f32.mrb[0].mxu0
    %v544 = vadd.f32 %v470, %v543
    %v545 = vpop.f32.mrb[0].mxu0
    %546 = vmatprep.mubr.f32.mxu0 %v398
    %547 = vmatmul.mubr.f32.gmra.mrb[0].mxu0 %v397
    %v548 = vpop.f32.mrb[0].mxu0
    %v549 = vadd.f32 %v470, %v548
    %v550 = vpop.f32.mrb[0].mxu0
    %551 = vdwg.mxu0
    %552 = vmatprep.subr.mxu0 0.0
    %553 = vmatpush1.msra.mxu0 %v433
    %554 = vmatprep.subr.mxu0 0.0
    %555 = vmatpush1.msra.mxu0 %v434
    %556 = vmatprep.subr.mxu0 0.0
    %557 = vmatpush1.msra.mxu0 %v435
    %558 = vmatprep.subr.mxu0 0.0
    %559 = vmatpush1.msra.mxu0 %v436
    %560 = vmatprep.subr.mxu0 0.0
    %561 = vmatpush1.msra.mxu0 %v437
    %562 = vmatprep.subr.mxu0 0.0
    %563 = vmatpush1.msra.mxu0 %v438
    %564 = vmatprep.subr.mxu0 0.0
    %565 = vmatpush1.msra.mxu0 %v439
    %566 = vmatprep.subr.mxu0 0.0
    %567 = vmatpush1.msra.mxu0 %v440
    %568 = vmatprep.subr.mxu0 0.0
    %569 = vmatpush1.msra.mxu0 %v441
    %570 = vmatprep.subr.mxu0 0.0
    %571 = vmatpush1.msra.mxu0 %v442
    %572 = vmatprep.subr.mxu0 0.0
    %573 = vmatpush1.msra.mxu0 %v443
    %574 = vmatprep.subr.mxu0 0.0
    %575 = vmatpush1.msra.mxu0 %v444
    %576 = vmatprep.subr.mxu0 0.0
    %577 = vmatpush1.msra.mxu0 %v445
    %578 = vmatprep.subr.mxu0 0.0
    %579 = vmatpush1.msra.mxu0 %v446
    %580 = vmatprep.subr.mxu0 0.0
    %581 = vmatpush1.msra.mxu0 %v447
    %582 = vmatprep.subr.mxu0 0.0
    %583 = vmatpush1.msra.mxu0 %v448
    %584 = vmatprep.subr.mxu0 0.0
    %585 = vmatpush1.msra.mxu0 %v449
    %586 = vmatprep.subr.mxu0 0.0
    %587 = vmatpush1.msra.mxu0 %v450
    %588 = vmatprep.subr.mxu0 0.0
    %589 = vmatpush1.msra.mxu0 %v451
    %590 = vmatprep.subr.mxu0 0.0
    %591 = vmatpush1.msra.mxu0 %v452
    %592 = vmatprep.subr.mxu0 0.0
    %593 = vmatpush1.msra.mxu0 %v453
    %594 = vmatprep.subr.mxu0 0.0
    %595 = vmatpush1.msra.mxu0 %v454
    %596 = vmatprep.subr.mxu0 0.0
    %597 = vmatpush1.msra.mxu0 %v455
    %598 = vmatprep.subr.mxu0 0.0
    %599 = vmatpush1.msra.mxu0 %v456
    %600 = vmatprep.subr.mxu0 0.0
    %601 = vmatpush1.msra.mxu0 %v457
    %602 = vmatprep.subr.mxu0 0.0
    %603 = vmatpush1.msra.mxu0 %v458
    %604 = vmatprep.subr.mxu0 0.0
    %605 = vmatpush1.msra.mxu0 %v459
    %606 = vmatprep.subr.mxu0 0.0
    %607 = vmatpush1.msra.mxu0 %v460
    %608 = vmatprep.subr.mxu0 0.0
    %609 = vmatpush1.msra.mxu0 %v461
    %610 = vmatprep.subr.mxu0 0.0
    %611 = vmatpush1.msra.mxu0 %v462
    %612 = vmatprep.subr.mxu0 0.0
    %613 = vmatpush1.msra.mxu0 %v463
    %614 = vmatprep.subr.mxu0 0.0
    %615 = vmatpush1.msra.mxu0 %v464
    %616 = vmatprep.mubr.f32.mxu0 %v392
    %617 = vmatmul.mubr.f32.gmra.mrb[0].mxu0 %v391
    %v618 = vpop.f32.mrb[0].mxu0
    %v619 = vadd.f32 %v539, %v618
    %v620 = vpop.f32.mrb[0].mxu0
    %621 = vmatprep.mubr.f32.mxu0 %v396
    %622 = vmatmul.mubr.f32.gmra.mrb[0].mxu0 %v395
    %v623 = vpop.f32.mrb[0].mxu0
    %v624 = vadd.f32 %v544, %v623
    %v625 = vpop.f32.mrb[0].mxu0
    %626 = vmatprep.mubr.f32.mxu0 %v400
    %627 = vmatmul.mubr.f32.gmra.mrb[0].mxu0 %v399
    %v628 = vpop.f32.mrb[0].mxu0
    %v629 = vadd.f32 %v549, %v628
    %v630 = vpop.f32.mrb[0].mxu0
    %631 = vdwg.mxu0
    %632 = vst [vmem:[#allocation8] sm:$0xff] %v619
    %633 = vst [vmem:[#allocation8 + $0x8] sm:$0xff] %v624
    %634 = vst [vmem:[#allocation8 + $0x10] sm:$0xff] %v629
    // Predicated region
    $region34: #{tpu_custom_call.1} parent=1 // pred_check
      _
    $region35: #{tpu_custom_call.1} parent=1 // pred_check_branch
      %636 = sbr.rel (0) target = $region37
    $region36: #{tpu_custom_call.1} parent=1 // pred_region
      %s638 = ssub.s32 384, 384
      %639 = vsyncadd [#allocation4], %s638
      %s640 = sshll.u32 [#allocation8], 4
      %s641 = int_to_ptr.vmem [resolvable:$true] %s640
      %646 = dma.vmem_to_hbm [thread:$0]  %s641, 384, %s5, [#allocation4], 128, 128, 8
    $region37: #{tpu_custom_call.1} parent=1 // pred_fallthru
      _
    // Predicated region
    $region38: #{tpu_custom_call.1} parent=1 // pred_check
      _
    $region39: #{tpu_custom_call.1} parent=1 // pred_check_branch
      %648 = sbr.rel (0) target = $region41
    $region40: #{tpu_custom_call.1} parent=1 // pred_region
      %649 = dma.done [#allocation4], 384
    $region41: #{tpu_custom_call.1} parent=1 // pred_fallthru
      _
    %650 = vsyncpa [#allocation3], 1
    %651 = vsyncpa [#allocation6], 1
    %652 = vsyncpa [#allocation4], 1

</llo_original>
